<compile_context>
chip_gen: v6e
topology: v6e:2x2x1
jax: 0.10.0
libtpu: 0.0.40
codegen_flags: <defaults>
</compile_context>

<pallas_src>
import functools

import jax
import jax.numpy as jnp
from jax.experimental import pallas as pl
from jax.experimental.pallas import tpu as pltpu

EPS = 1e-5


# --------------------------------------------------------------------------------------
# Stage 1: conv1 (fused K=3*Cin matmul) [+ 1x1 downsample conv], per-batch BN partial stats
# --------------------------------------------------------------------------------------
def _make_stage1_kernel(Lout, Cin, Cout, stride, has_down):
    def tap(x_ref, k):
        # x_ref is the (L+2, Cin) zero-padded input for this batch element.
        # conv1 output l uses x_pad[s*l + k]  (k = 0,1,2).
        if stride == 1:
            return x_ref[pl.ds(k, Lout), :]
        return x_ref[pl.ds(k, Lout, stride=stride), :]

    def write_stats(h, s_ref):
        # Per-batch mean + centered sum of squares (combined across batches in JAX glue).
        mu = jnp.mean(h, axis=0, keepdims=True)
        d = h - mu
        s_ref[0:1, :] = mu
        s_ref[1:2, :] = jnp.sum(d * d, axis=0, keepdims=True)

    def conv1(x_ref, w1_ref, xcat_ref):
        # Build the (Lout, 3*Cin) im2col tile once in VMEM, then a single MXU dot.
        xcat_ref[:, 0:Cin] = tap(x_ref, 0)
        xcat_ref[:, Cin:2 * Cin] = tap(x_ref, 1)
        xcat_ref[:, 2 * Cin:3 * Cin] = tap(x_ref, 2)
        return jnp.dot(xcat_ref[...], w1_ref[...],
                       preferred_element_type=jnp.float32)

    if has_down:
        def kernel(x_ref, w1_ref, wd_ref, h1_ref, s1_ref, r_ref, sd_ref, xcat_ref):
            h1 = conv1(x_ref, w1_ref, xcat_ref)
            h1_ref[...] = h1
            write_stats(h1, s1_ref)
            # 1x1 strided downsample conv: its input is exactly the center tap.
            r = jnp.dot(xcat_ref[:, Cin:2 * Cin], wd_ref[...],
                        preferred_element_type=jnp.float32)
            r_ref[...] = r
            write_stats(r, sd_ref)
        return kernel

    def kernel(x_ref, w1_ref, h1_ref, s1_ref, xcat_ref):
        h1 = conv1(x_ref, w1_ref, xcat_ref)
        h1_ref[...] = h1
        write_stats(h1, s1_ref)
    return kernel


# --------------------------------------------------------------------------------------
# Stage 2: folded bn1 + relu + conv2 (fused K=3*Cout matmul), per-batch BN2 partial stats
# --------------------------------------------------------------------------------------
def _make_stage2_kernel(Lout, Cout, cdt):
    def kernel(h1_ref, sc1_ref, sh1_ref, w2_ref, h2_ref, s2_ref, hcat_ref):
        # Folded BN: h*scale + shift (scale/shift precomputed in f32), then ReLU.
        h1n = jnp.maximum(h1_ref[...] * sc1_ref[...] + sh1_ref[...], 0.0)
        hc = h1n.astype(cdt)
        zrow = jnp.zeros((1, Cout), cdt)
        # im2col tile for conv2 (stride 1, pad 1): only the two halo rows are zeroed.
        # tap k=0 -> h[l-1]
        hcat_ref[0:1, 0:Cout] = zrow
        hcat_ref[1:Lout, 0:Cout] = hc[0:Lout - 1, :]
        # tap k=1 -> h[l]
        hcat_ref[:, Cout:2 * Cout] = hc
        # tap k=2 -> h[l+1]
        hcat_ref[0:Lout - 1, 2 * Cout:3 * Cout] = hc[1:Lout, :]
        hcat_ref[Lout - 1:Lout, 2 * Cout:3 * Cout] = zrow

        h2 = jnp.dot(hcat_ref[...], w2_ref[...],
                     preferred_element_type=jnp.float32)
        h2_ref[...] = h2
        mu = jnp.mean(h2, axis=0, keepdims=True)
        d = h2 - mu
        s2_ref[0:1, :] = mu
        s2_ref[1:2, :] = jnp.sum(d * d, axis=0, keepdims=True)
    return kernel


# --------------------------------------------------------------------------------------
# Stage 3: folded bn2 + (folded bn_d residual | identity residual) + add + relu
# --------------------------------------------------------------------------------------
def _make_stage3_kernel(has_down):
    if has_down:
        def kernel(h2_ref, r_ref, sc2_ref, sh2_ref, scd_ref, shd_ref, o_ref):
            out = (h2_ref[...] * sc2_ref[...] + sh2_ref[...]
                   + r_ref[...] * scd_ref[...] + shd_ref[...])
            o_ref[...] = jnp.maximum(out, 0.0)
        return kernel

    def kernel(h2_ref, r_ref, sc2_ref, sh2_ref, o_ref):
        out = h2_ref[...] * sc2_ref[...] + sh2_ref[...] + r_ref[...]
        o_ref[...] = jnp.maximum(out, 0.0)
    return kernel


# --------------------------------------------------------------------------------------
# JAX glue: combine per-batch partial stats (Chan parallel-variance formula, no
# E[x^2]-mu^2 cancellation) and fold BN into scale/shift.
# --------------------------------------------------------------------------------------
def _combine_stats(stats, count):
    # stats: (N, 2, C) with [:,0]=per-batch mean, [:,1]=per-batch sum((x-mean)^2)
    mu_b = stats[:, 0, :]
    m2_b = stats[:, 1, :]
    mu = jnp.mean(mu_b, axis=0)
    m2 = jnp.sum(m2_b, axis=0) + count * jnp.sum((mu_b - mu) ** 2, axis=0)
    var = m2 / (stats.shape[0] * count)          # biased variance (BatchNorm train mode)
    return mu, var


def _scale_shift(gamma, beta, mu, var):
    scale = gamma.astype(jnp.float32) * jax.lax.rsqrt(var + EPS)
    shift = beta.astype(jnp.float32) - mu * scale
    return scale.reshape(1, -1), shift.reshape(1, -1)


# --------------------------------------------------------------------------------------
# Public wrapper (PyTorch NCL in / NCL out)
# --------------------------------------------------------------------------------------
@functools.partial(jax.jit, static_argnames=("stride", "compute_dtype"))
def residual_block_forward(x, params, stride, compute_dtype=jnp.bfloat16):
    """x: (N, Cin, L) float32. Returns (N, Cout, Lout) float32."""
    N, Cin, L = x.shape
    Cout = params["w1"].shape[0]
    has_down = (stride != 1) or (Cin != Cout)
    Lout = (L - 1) // stride + 1
    cdt = compute_dtype

    # Layout glue: NCL -> NLC + pad length by 1 each side (single fused HBM pass).
    x_nlc = jnp.transpose(x, (0, 2, 1))
    x_pad = jnp.pad(x_nlc, ((0, 0), (1, 1), (0, 0))).astype(cdt)       # (N, L+2, Cin)

    # Fused conv weights: row index = k*C + c  -> each conv is one K=3*C matmul.
    w1f = jnp.transpose(params["w1"], (2, 1, 0)).reshape(3 * Cin, Cout).astype(cdt)
    w2f = jnp.transpose(params["w2"], (2, 1, 0)).reshape(3 * Cout, Cout).astype(cdt)

    par = pltpu.CompilerParams(dimension_semantics=("parallel",))
    row_spec = pl.BlockSpec((None, Lout, Cout), lambda n: (n, 0, 0))
    stat_spec = pl.BlockSpec((None, 2, Cout), lambda n: (n, 0, 0))
    vec_spec = pl.BlockSpec((1, Cout), lambda n: (0, 0))

    # ---------------- stage 1: conv1 (+ downsample conv) + partial stats ----------------
    in_specs1 = [pl.BlockSpec((None, L + 2, Cin), lambda n: (n, 0, 0)),
                 pl.BlockSpec((3 * Cin, Cout), lambda n: (0, 0))]
    args1 = [x_pad, w1f]
    out_shapes1 = [jax.ShapeDtypeStruct((N, Lout, Cout), jnp.float32),
                   jax.ShapeDtypeStruct((N, 2, Cout), jnp.float32)]
    out_specs1 = [row_spec, stat_spec]
    if has_down:
        wd = jnp.transpose(params["wd"][:, :, 0], (1, 0)).astype(cdt)   # (Cin, Cout)
        in_specs1.append(pl.BlockSpec((Cin, Cout), lambda n: (0, 0)))
        args1.append(wd)
        out_shapes1 += [jax.ShapeDtypeStruct((N, Lout, Cout), jnp.float32),
                        jax.ShapeDtypeStruct((N, 2, Cout), jnp.float32)]
        out_specs1 += [row_spec, stat_spec]

    res1 = pl.pallas_call(
        _make_stage1_kernel(Lout, Cin, Cout, stride, has_down),
        grid=(N,),
        in_specs=in_specs1,
        out_specs=tuple(out_specs1),
        out_shape=tuple(out_shapes1),
        scratch_shapes=[pltpu.VMEM((Lout, 3 * Cin), cdt)],
        compiler_params=par,
    )(*args1)
    if has_down:
        h1_lin, s1, r_lin, sd = res1
    else:
        h1_lin, s1 = res1

    mu1, var1 = _combine_stats(s1, Lout)
    sc1, sh1 = _scale_shift(params["g1"], params["b1"], mu1, var1)

    # ---------------- stage 2: bn1 + relu + conv2 + partial stats ------------------------
    h2_lin, s2 = pl.pallas_call(
        _make_stage2_kernel(Lout, Cout, cdt),
        grid=(N,),
        in_specs=[row_spec, vec_spec, vec_spec,
                  pl.BlockSpec((3 * Cout, Cout), lambda n: (0, 0))],
        out_specs=(row_spec, stat_spec),
        out_shape=(jax.ShapeDtypeStruct((N, Lout, Cout), jnp.float32),
                   jax.ShapeDtypeStruct((N, 2, Cout), jnp.float32)),
        scratch_shapes=[pltpu.VMEM((Lout, 3 * Cout), cdt)],
        compiler_params=par,
    )(h1_lin, sc1, sh1, w2f)

    mu2, var2 = _combine_stats(s2, Lout)
    sc2, sh2 = _scale_shift(params["g2"], params["b2"], mu2, var2)

    # ---------------- stage 3: bn2 + residual + relu -------------------------------------
    if has_down:
        mud, vard = _combine_stats(sd, Lout)
        scd, shd = _scale_shift(params["gd"], params["bd"], mud, vard)
        in_specs3 = [row_spec, row_spec, vec_spec, vec_spec, vec_spec, vec_spec]
        args3 = (h2_lin, r_lin, sc2, sh2, scd, shd)
    else:
        in_specs3 = [row_spec, row_spec, vec_spec, vec_spec]
        args3 = (h2_lin, x_nlc.astype(jnp.float32), sc2, sh2)

    out_nlc = pl.pallas_call(
        _make_stage3_kernel(has_down),
        grid=(N,),
        in_specs=in_specs3,
        out_specs=row_spec,
        out_shape=jax.ShapeDtypeStruct((N, Lout, Cout), jnp.float32),
        compiler_params=par,
    )(*args3)

    # Back to the module's NCL convention (kept to match the PyTorch output contract).
    return jnp.transpose(out_nlc, (0, 2, 1))


# ---------------------------------- pure-JAX reference ----------------------------------
def _ref_forward(x, params, stride):
    Cin = x.shape[1]
    Cout = params["w1"].shape[0]
    has_down = (stride != 1) or (Cin != Cout)

    def conv1d(h, w, s, pad):
        return jax.lax.conv_general_dilated(
            h, w, window_strides=(s,), padding=[(pad, pad)],
            dimension_numbers=("NCH", "OIH", "NCH"))

    def bn(h, g, b):
        mu = h.mean(axis=(0, 2), keepdims=True)
        var = ((h - mu) ** 2).mean(axis=(0, 2), keepdims=True)
        return (h - mu) / jnp.sqrt(var + EPS) * g.reshape(1, -1, 1) + b.reshape(1, -1, 1)

    h = jax.nn.relu(bn(conv1d(x, params["w1"], stride, 1), params["g1"], params["b1"]))
    h = bn(conv1d(h, params["w2"], 1, 1), params["g2"], params["b2"])
    if has_down:
        r = bn(conv1d(x, params["wd"], stride, 0), params["gd"], params["bd"])
    else:
        r = x
    return jax.nn.relu(h + r)


def _init_params(key, Cin, Cout, has_down):
    ks = jax.random.split(key, 9)
    p = {
        "w1": jax.random.normal(ks[0], (Cout, Cin, 3), jnp.float32) * 0.2,
        "g1": jax.random.uniform(ks[1], (Cout,), jnp.float32, 0.5, 1.5),
        "b1": jax.random.normal(ks[2], (Cout,), jnp.float32) * 0.1,
        "w2": jax.random.normal(ks[3], (Cout, Cout, 3), jnp.float32) * 0.2,
        "g2": jax.random.uniform(ks[4], (Cout,), jnp.float32, 0.5, 1.5),
        "b2": jax.random.normal(ks[5], (Cout,), jnp.float32) * 0.1,
    }
    if has_down:
        p["wd"] = jax.random.normal(ks[6], (Cout, Cin, 1), jnp.float32) * 0.2
        p["gd"] = jax.random.uniform(ks[7], (Cout,), jnp.float32, 0.5, 1.5)
        p["bd"] = jax.random.normal(ks[8], (Cout,), jnp.float32) * 0.1
    return p


if __name__ == "__main__":
    key = jax.random.PRNGKey(0)
    k_x1, k_p1, k_x2, k_p2 = jax.random.split(key, 4)

    # Case 1: stride=2 and channel change -> exercises the downsample branch.
    N, Cin, Cout, L, stride = 2, 4, 8, 16, 2
    x1 = jax.random.normal(k_x1, (N, Cin, L), jnp.float32)
    p1 = _init_params(k_p1, Cin, Cout, has_down=True)
    ref1 = _ref_forward(x1, p1, stride)

    out1_f32 = jax.block_until_ready(
        residual_block_forward(x1, p1, stride=stride, compute_dtype=jnp.float32))
    assert out1_f32.shape == (N, Cout, (L - 1) // stride + 1)
    assert jnp.allclose(out1_f32, ref1, rtol=1e-4, atol=1e-4), "mismatch (downsample, f32)"

    out1_bf16 = jax.block_until_ready(
        residual_block_forward(x1, p1, stride=stride))   # bf16 MXU operands (default)
    assert jnp.allclose(out1_bf16, ref1, rtol=5e-2, atol=5e-2), "mismatch (downsample, bf16)"

    # Case 2: stride=1 and same channels -> identity residual branch.
    N2, C2, L2 = 2, 8, 16
    x2 = jax.random.normal(k_x2, (N2, C2, L2), jnp.float32)
    p2 = _init_params(k_p2, C2, C2, has_down=False)
    ref2 = _ref_forward(x2, p2, 1)

    out2_f32 = jax.block_until_ready(
        residual_block_forward(x2, p2, stride=1, compute_dtype=jnp.float32))
    assert out2_f32.shape == (N2, C2, L2)
    assert jnp.allclose(out2_f32, ref2, rtol=1e-4, atol=1e-4), "mismatch (identity, f32)"

    out2_bf16 = jax.block_until_ready(residual_block_forward(x2, p2, stride=1))
    assert jnp.allclose(out2_bf16, ref2, rtol=5e-2, atol=5e-2), "mismatch (identity, bf16)"

    print("KERNEL_OK")
</pallas_src>

<mosaic_0001>
module attributes {stable_mosaic.version = 11 : i64} {
  func.func @kernel(%arg0: i32, %arg1: memref<1x18x4xf32, #tpu.memory_space<vmem>>, %arg2: memref<12x8xf32, #tpu.memory_space<vmem>>, %arg3: memref<4x8xf32, #tpu.memory_space<vmem>>, %arg4: memref<1x8x8xf32, #tpu.memory_space<vmem>>, %arg5: memref<1x2x8xf32, #tpu.memory_space<vmem>>, %arg6: memref<1x8x8xf32, #tpu.memory_space<vmem>>, %arg7: memref<1x2x8xf32, #tpu.memory_space<vmem>>, %arg8: memref<8x12xf32, #tpu.memory_space<vmem>>) attributes {dimension_semantics = [#tpu.dimension_semantics<parallel>], iteration_bounds = array<i64: 2>, scalar_prefetch = 0 : i64, scratch_operands = 1 : i64, tpu.core_type = #tpu.core_type<tc>, window_params = [{transform_indices = @transform_0, window_bounds = array<i64: 1, 18, 4>}, {pipeline_mode = #tpu.pipeline_mode<synchronous>, transform_indices = @transform_1, window_bounds = array<i64: 12, 8>}, {pipeline_mode = #tpu.pipeline_mode<synchronous>, transform_indices = @transform_2, window_bounds = array<i64: 4, 8>}, {transform_indices = @transform_3, window_bounds = array<i64: 1, 8, 8>}, {transform_indices = @transform_4, window_bounds = array<i64: 1, 2, 8>}, {transform_indices = @transform_5, window_bounds = array<i64: 1, 8, 8>}, {transform_indices = @transform_6, window_bounds = array<i64: 1, 2, 8>}]} {
    %c0 = arith.constant 0 : index
    %c0_0 = arith.constant 0 : index
    %c0_1 = arith.constant 0 : index
    %0 = tpu.strided_load %arg1[%c0, %c0_0, %c0_1] {strides = array<i32: 1, 2, 1>} : memref<1x18x4xf32, #tpu.memory_space<vmem>>, vector<1x8x4xf32>
    %1 = vector.shape_cast %0 : vector<1x8x4xf32> to vector<8x4xf32>
    %c0_2 = arith.constant 0 : index
    %c0_3 = arith.constant 0 : index
    %2 = vector.load %arg8[%c0_2, %c0_3] : memref<8x12xf32, #tpu.memory_space<vmem>>, vector<8x4xf32>
    tpu.vector_store %arg8[%c0_2, %c0_3], %1 {strides = array<i32>} : memref<8x12xf32, #tpu.memory_space<vmem>>, vector<8x4xf32>,
    %c0_4 = arith.constant 0 : index
    %c1 = arith.constant 1 : index
    %c0_5 = arith.constant 0 : index
    %3 = tpu.strided_load %arg1[%c0_4, %c1, %c0_5] {strides = array<i32: 1, 2, 1>} : memref<1x18x4xf32, #tpu.memory_space<vmem>>, vector<1x8x4xf32>
    %4 = vector.shape_cast %3 : vector<1x8x4xf32> to vector<8x4xf32>
    %c0_6 = arith.constant 0 : index
    %c4 = arith.constant 4 : index
    %5 = vector.load %arg8[%c0_6, %c4] : memref<8x12xf32, #tpu.memory_space<vmem>>, vector<8x4xf32>
    tpu.vector_store %arg8[%c0_6, %c4], %4 {strides = array<i32>} : memref<8x12xf32, #tpu.memory_space<vmem>>, vector<8x4xf32>,
    %c0_7 = arith.constant 0 : index
    %c2 = arith.constant 2 : index
    %c0_8 = arith.constant 0 : index
    %6 = tpu.strided_load %arg1[%c0_7, %c2, %c0_8] {strides = array<i32: 1, 2, 1>} : memref<1x18x4xf32, #tpu.memory_space<vmem>>, vector<1x8x4xf32>
    %7 = vector.shape_cast %6 : vector<1x8x4xf32> to vector<8x4xf32>
    %c0_9 = arith.constant 0 : index
    %c8 = arith.constant 8 : index
    %8 = vector.load %arg8[%c0_9, %c8] : memref<8x12xf32, #tpu.memory_space<vmem>>, vector<8x4xf32>
    tpu.vector_store %arg8[%c0_9, %c8], %7 {strides = array<i32>} : memref<8x12xf32, #tpu.memory_space<vmem>>, vector<8x4xf32>,
    %c0_10 = arith.constant 0 : index
    %c0_11 = arith.constant 0 : index
    %9 = vector.load %arg8[%c0_10, %c0_11] : memref<8x12xf32, #tpu.memory_space<vmem>>, vector<8x12xf32>
    %c0_12 = arith.constant 0 : index
    %c0_13 = arith.constant 0 : index
    %10 = vector.load %arg2[%c0_12, %c0_13] : memref<12x8xf32, #tpu.memory_space<vmem>>, vector<12x8xf32>
    %cst = arith.constant dense<0.000000e+00> : vector<8x8xf32>
    %11 = tpu.matmul %9, %10, %cst {dimension_numbers = #tpu.dot_dimension_numbers<[1], [0], [0], [1], [0, 0, 1, 1], [], []>} : vector<8x12xf32>, vector<12x8xf32>, vector<8x8xf32> -> vector<8x8xf32>
    %c0_14 = arith.constant 0 : index
    %c0_15 = arith.constant 0 : index
    %c0_16 = arith.constant 0 : index
    %12 = vector.load %arg4[%c0_14, %c0_15, %c0_16] : memref<1x8x8xf32, #tpu.memory_space<vmem>>, vector<1x8x8xf32>
    %13 = vector.shape_cast %12 : vector<1x8x8xf32> to vector<8x8xf32>
    %14 = vector.shape_cast %11 : vector<8x8xf32> to vector<1x8x8xf32>
    tpu.vector_store %arg4[%c0_14, %c0_15, %c0_16], %14 {strides = array<i32>} : memref<1x8x8xf32, #tpu.memory_space<vmem>>, vector<1x8x8xf32>,
    %cst_17 = arith.constant dense<0.000000e+00> : vector<8xf32>
    %15 = vector.multi_reduction <add>, %11, %cst_17 [0] : vector<8x8xf32> to vector<8xf32>
    %16 = vector.shape_cast %15 : vector<8xf32> to vector<1x8xf32>
    %cst_18 = arith.constant 8.000000e+00 : f32
    %17 = vector.broadcast %cst_18 : f32 to vector<1x8xf32>
    %18 = arith.divf %16, %17 : vector<1x8xf32>
    %19 = vector.broadcast %18 : vector<1x8xf32> to vector<8x8xf32>
    %20 = arith.subf %11, %19 : vector<8x8xf32>
    %c0_19 = arith.constant 0 : index
    %c0_20 = arith.constant 0 : index
    %c0_21 = arith.constant 0 : index
    %21 = vector.load %arg5[%c0_19, %c0_20, %c0_21] : memref<1x2x8xf32, #tpu.memory_space<vmem>>, vector<1x1x8xf32>
    %22 = vector.shape_cast %21 : vector<1x1x8xf32> to vector<1x8xf32>
    %23 = vector.shape_cast %18 : vector<1x8xf32> to vector<1x1x8xf32>
    tpu.vector_store %arg5[%c0_19, %c0_20, %c0_21], %23 {strides = array<i32>} : memref<1x2x8xf32, #tpu.memory_space<vmem>>, vector<1x1x8xf32>,
    %24 = arith.mulf %20, %20 : vector<8x8xf32>
    %cst_22 = arith.constant dense<0.000000e+00> : vector<8xf32>
    %25 = vector.multi_reduction <add>, %24, %cst_22 [0] : vector<8x8xf32> to vector<8xf32>
    %26 = vector.shape_cast %25 : vector<8xf32> to vector<1x8xf32>
    %c0_23 = arith.constant 0 : index
    %c1_24 = arith.constant 1 : index
    %c0_25 = arith.constant 0 : index
    %27 = vector.load %arg5[%c0_23, %c1_24, %c0_25] : memref<1x2x8xf32, #tpu.memory_space<vmem>>, vector<1x1x8xf32>
    %28 = vector.shape_cast %27 : vector<1x1x8xf32> to vector<1x8xf32>
    %29 = vector.shape_cast %26 : vector<1x8xf32> to vector<1x1x8xf32>
    tpu.vector_store %arg5[%c0_23, %c1_24, %c0_25], %29 {strides = array<i32>} : memref<1x2x8xf32, #tpu.memory_space<vmem>>, vector<1x1x8xf32>,
    %c0_26 = arith.constant 0 : index
    %c4_27 = arith.constant 4 : index
    %30 = vector.load %arg8[%c0_26, %c4_27] : memref<8x12xf32, #tpu.memory_space<vmem>>, vector<8x4xf32>
    %c0_28 = arith.constant 0 : index
    %c0_29 = arith.constant 0 : index
    %31 = vector.load %arg3[%c0_28, %c0_29] : memref<4x8xf32, #tpu.memory_space<vmem>>, vector<4x8xf32>
    %cst_30 = arith.constant dense<0.000000e+00> : vector<8x8xf32>
    %32 = tpu.matmul %30, %31, %cst_30 {dimension_numbers = #tpu.dot_dimension_numbers<[1], [0], [0], [1], [0, 0, 1, 1], [], []>} : vector<8x4xf32>, vector<4x8xf32>, vector<8x8xf32> -> vector<8x8xf32>
    %c0_31 = arith.constant 0 : index
    %c0_32 = arith.constant 0 : index
    %c0_33 = arith.constant 0 : index
    %33 = vector.load %arg6[%c0_31, %c0_32, %c0_33] : memref<1x8x8xf32, #tpu.memory_space<vmem>>, vector<1x8x8xf32>
    %34 = vector.shape_cast %33 : vector<1x8x8xf32> to vector<8x8xf32>
    %35 = vector.shape_cast %32 : vector<8x8xf32> to vector<1x8x8xf32>
    tpu.vector_store %arg6[%c0_31, %c0_32, %c0_33], %35 {strides = array<i32>} : memref<1x8x8xf32, #tpu.memory_space<vmem>>, vector<1x8x8xf32>,
    %cst_34 = arith.constant dense<0.000000e+00> : vector<8xf32>
    %36 = vector.multi_reduction <add>, %32, %cst_34 [0] : vector<8x8xf32> to vector<8xf32>
    %37 = vector.shape_cast %36 : vector<8xf32> to vector<1x8xf32>
    %cst_35 = arith.constant 8.000000e+00 : f32
    %38 = vector.broadcast %cst_35 : f32 to vector<1x8xf32>
    %39 = arith.divf %37, %38 : vector<1x8xf32>
    %40 = vector.broadcast %39 : vector<1x8xf32> to vector<8x8xf32>
    %41 = arith.subf %32, %40 : vector<8x8xf32>
    %c0_36 = arith.constant 0 : index
    %c0_37 = arith.constant 0 : index
    %c0_38 = arith.constant 0 : index
    %42 = vector.load %arg7[%c0_36, %c0_37, %c0_38] : memref<1x2x8xf32, #tpu.memory_space<vmem>>, vector<1x1x8xf32>
    %43 = vector.shape_cast %42 : vector<1x1x8xf32> to vector<1x8xf32>
    %44 = vector.shape_cast %39 : vector<1x8xf32> to vector<1x1x8xf32>
    tpu.vector_store %arg7[%c0_36, %c0_37, %c0_38], %44 {strides = array<i32>} : memref<1x2x8xf32, #tpu.memory_space<vmem>>, vector<1x1x8xf32>,
    %45 = arith.mulf %41, %41 : vector<8x8xf32>
    %cst_39 = arith.constant dense<0.000000e+00> : vector<8xf32>
    %46 = vector.multi_reduction <add>, %45, %cst_39 [0] : vector<8x8xf32> to vector<8xf32>
    %47 = vector.shape_cast %46 : vector<8xf32> to vector<1x8xf32>
    %c0_40 = arith.constant 0 : index
    %c1_41 = arith.constant 1 : index
    %c0_42 = arith.constant 0 : index
    %48 = vector.load %arg7[%c0_40, %c1_41, %c0_42] : memref<1x2x8xf32, #tpu.memory_space<vmem>>, vector<1x1x8xf32>
    %49 = vector.shape_cast %48 : vector<1x1x8xf32> to vector<1x8xf32>
    %50 = vector.shape_cast %47 : vector<1x8xf32> to vector<1x1x8xf32>
    tpu.vector_store %arg7[%c0_40, %c1_41, %c0_42], %50 {strides = array<i32>} : memref<1x2x8xf32, #tpu.memory_space<vmem>>, vector<1x1x8xf32>,
    return
  }
  func.func @transform_0(%arg0: i32) -> (i32, i32, i32) {
    %c0_i32 = arith.constant 0 : i32
    %c0_i32_0 = arith.constant 0 : i32
    %c0_i32_1 = arith.constant 0 : i32
    return %arg0, %c0_i32, %c0_i32_0 : i32, i32, i32
  }
  func.func @transform_1(%arg0: i32) -> (i32, i32) {
    %c0_i32 = arith.constant 0 : i32
    %c0_i32_0 = arith.constant 0 : i32
    %c0_i32_1 = arith.constant 0 : i32
    return %c0_i32, %c0_i32_0 : i32, i32
  }
  func.func @transform_2(%arg0: i32) -> (i32, i32) {
    %c0_i32 = arith.constant 0 : i32
    %c0_i32_0 = arith.constant 0 : i32
    %c0_i32_1 = arith.constant 0 : i32
    return %c0_i32, %c0_i32_0 : i32, i32
  }
  func.func @transform_3(%arg0: i32) -> (i32, i32, i32) {
    %c0_i32 = arith.constant 0 : i32
    %c0_i32_0 = arith.constant 0 : i32
    %c0_i32_1 = arith.constant 0 : i32
    return %arg0, %c0_i32, %c0_i32_0 : i32, i32, i32
  }
  func.func @transform_4(%arg0: i32) -> (i32, i32, i32) {
    %c0_i32 = arith.constant 0 : i32
    %c0_i32_0 = arith.constant 0 : i32
    %c0_i32_1 = arith.constant 0 : i32
    return %arg0, %c0_i32, %c0_i32_0 : i32, i32, i32
  }
  func.func @transform_5(%arg0: i32) -> (i32, i32, i32) {
    %c0_i32 = arith.constant 0 : i32
    %c0_i32_0 = arith.constant 0 : i32
    %c0_i32_1 = arith.constant 0 : i32
    return %arg0, %c0_i32, %c0_i32_0 : i32, i32, i32
  }
  func.func @transform_6(%arg0: i32) -> (i32, i32, i32) {
    %c0_i32 = arith.constant 0 : i32
    %c0_i32_0 = arith.constant 0 : i32
    %c0_i32_1 = arith.constant 0 : i32
    return %arg0, %c0_i32, %c0_i32_0 : i32, i32, i32
  }
}

module attributes {stable_mosaic.version = 11 : i64} {
  func.func @kernel(%arg0: i32, %arg1: memref<1x8x8xf32, #tpu.memory_space<vmem>>, %arg2: memref<1x8xf32, #tpu.memory_space<vmem>>, %arg3: memref<1x8xf32, #tpu.memory_space<vmem>>, %arg4: memref<24x8xf32, #tpu.memory_space<vmem>>, %arg5: memref<1x8x8xf32, #tpu.memory_space<vmem>>, %arg6: memref<1x2x8xf32, #tpu.memory_space<vmem>>, %arg7: memref<8x24xf32, #tpu.memory_space<vmem>>) attributes {dimension_semantics = [#tpu.dimension_semantics<parallel>], iteration_bounds = array<i64: 2>, scalar_prefetch = 0 : i64, scratch_operands = 1 : i64, tpu.core_type = #tpu.core_type<tc>, window_params = [{transform_indices = @transform_0, window_bounds = array<i64: 1, 8, 8>}, {pipeline_mode = #tpu.pipeline_mode<synchronous>, transform_indices = @transform_1, window_bounds = array<i64: 1, 8>}, {pipeline_mode = #tpu.pipeline_mode<synchronous>, transform_indices = @transform_2, window_bounds = array<i64: 1, 8>}, {pipeline_mode = #tpu.pipeline_mode<synchronous>, transform_indices = @transform_3, window_bounds = array<i64: 24, 8>}, {transform_indices = @transform_4, window_bounds = array<i64: 1, 8, 8>}, {transform_indices = @transform_5, window_bounds = array<i64: 1, 2, 8>}]} {
    %c0 = arith.constant 0 : index
    %c0_0 = arith.constant 0 : index
    %c0_1 = arith.constant 0 : index
    %0 = vector.load %arg1[%c0, %c0_0, %c0_1] : memref<1x8x8xf32, #tpu.memory_space<vmem>>, vector<1x8x8xf32>
    %1 = vector.shape_cast %0 : vector<1x8x8xf32> to vector<8x8xf32>
    %c0_2 = arith.constant 0 : index
    %c0_3 = arith.constant 0 : index
    %2 = vector.load %arg2[%c0_2, %c0_3] : memref<1x8xf32, #tpu.memory_space<vmem>>, vector<1x8xf32>
    %3 = vector.broadcast %2 : vector<1x8xf32> to vector<8x8xf32>
    %4 = arith.mulf %1, %3 : vector<8x8xf32>
    %c0_4 = arith.constant 0 : index
    %c0_5 = arith.constant 0 : index
    %5 = vector.load %arg3[%c0_4, %c0_5] : memref<1x8xf32, #tpu.memory_space<vmem>>, vector<1x8xf32>
    %6 = vector.broadcast %5 : vector<1x8xf32> to vector<8x8xf32>
    %7 = arith.addf %4, %6 : vector<8x8xf32>
    %cst = arith.constant 0.000000e+00 : f32
    %8 = vector.broadcast %cst : f32 to vector<8x8xf32>
    %9 = arith.maximumf %7, %8 : vector<8x8xf32>
    %cst_6 = arith.constant 0.000000e+00 : f32
    %10 = vector.broadcast %cst_6 : f32 to vector<1x8xf32>
    %c0_7 = arith.constant 0 : index
    %c0_8 = arith.constant 0 : index
    %11 = vector.load %arg7[%c0_7, %c0_8] : memref<8x24xf32, #tpu.memory_space<vmem>>, vector<1x8xf32>
    tpu.vector_store %arg7[%c0_7, %c0_8], %10 {strides = array<i32>} : memref<8x24xf32, #tpu.memory_space<vmem>>, vector<1x8xf32>,
    %12 = vector.extract_strided_slice %9 {offsets = [0, 0], sizes = [7, 8], strides = [1, 1]} : vector<8x8xf32> to vector<7x8xf32>
    %c1 = arith.constant 1 : index
    %c0_9 = arith.constant 0 : index
    %13 = vector.load %arg7[%c1, %c0_9] : memref<8x24xf32, #tpu.memory_space<vmem>>, vector<7x8xf32>
    tpu.vector_store %arg7[%c1, %c0_9], %12 {strides = array<i32>} : memref<8x24xf32, #tpu.memory_space<vmem>>, vector<7x8xf32>,
    %c0_10 = arith.constant 0 : index
    %c8 = arith.constant 8 : index
    %14 = vector.load %arg7[%c0_10, %c8] : memref<8x24xf32, #tpu.memory_space<vmem>>, vector<8x8xf32>
    tpu.vector_store %arg7[%c0_10, %c8], %9 {strides = array<i32>} : memref<8x24xf32, #tpu.memory_space<vmem>>, vector<8x8xf32>,
    %15 = vector.extract_strided_slice %9 {offsets = [1, 0], sizes = [7, 8], strides = [1, 1]} : vector<8x8xf32> to vector<7x8xf32>
    %c0_11 = arith.constant 0 : index
    %c16 = arith.constant 16 : index
    %16 = vector.load %arg7[%c0_11, %c16] : memref<8x24xf32, #tpu.memory_space<vmem>>, vector<7x8xf32>
    tpu.vector_store %arg7[%c0_11, %c16], %15 {strides = array<i32>} : memref<8x24xf32, #tpu.memory_space<vmem>>, vector<7x8xf32>,
    %c7 = arith.constant 7 : index
    %c16_12 = arith.constant 16 : index
    %17 = vector.load %arg7[%c7, %c16_12] : memref<8x24xf32, #tpu.memory_space<vmem>>, vector<1x8xf32>
    tpu.vector_store %arg7[%c7, %c16_12], %10 {strides = array<i32>} : memref<8x24xf32, #tpu.memory_space<vmem>>, vector<1x8xf32>,
    %c0_13 = arith.constant 0 : index
    %c0_14 = arith.constant 0 : index
    %18 = vector.load %arg7[%c0_13, %c0_14] : memref<8x24xf32, #tpu.memory_space<vmem>>, vector<8x24xf32>
    %c0_15 = arith.constant 0 : index
    %c0_16 = arith.constant 0 : index
    %19 = vector.load %arg4[%c0_15, %c0_16] : memref<24x8xf32, #tpu.memory_space<vmem>>, vector<24x8xf32>
    %cst_17 = arith.constant dense<0.000000e+00> : vector<8x8xf32>
    %20 = tpu.matmul %18, %19, %cst_17 {dimension_numbers = #tpu.dot_dimension_numbers<[1], [0], [0], [1], [0, 0, 1, 1], [], []>} : vector<8x24xf32>, vector<24x8xf32>, vector<8x8xf32> -> vector<8x8xf32>
    %c0_18 = arith.constant 0 : index
    %c0_19 = arith.constant 0 : index
    %c0_20 = arith.constant 0 : index
    %21 = vector.load %arg5[%c0_18, %c0_19, %c0_20] : memref<1x8x8xf32, #tpu.memory_space<vmem>>, vector<1x8x8xf32>
    %22 = vector.shape_cast %21 : vector<1x8x8xf32> to vector<8x8xf32>
    %23 = vector.shape_cast %20 : vector<8x8xf32> to vector<1x8x8xf32>
    tpu.vector_store %arg5[%c0_18, %c0_19, %c0_20], %23 {strides = array<i32>} : memref<1x8x8xf32, #tpu.memory_space<vmem>>, vector<1x8x8xf32>,
    %cst_21 = arith.constant dense<0.000000e+00> : vector<8xf32>
    %24 = vector.multi_reduction <add>, %20, %cst_21 [0] : vector<8x8xf32> to vector<8xf32>
    %25 = vector.shape_cast %24 : vector<8xf32> to vector<1x8xf32>
    %cst_22 = arith.constant 8.000000e+00 : f32
    %26 = vector.broadcast %cst_22 : f32 to vector<1x8xf32>
    %27 = arith.divf %25, %26 : vector<1x8xf32>
    %28 = vector.broadcast %27 : vector<1x8xf32> to vector<8x8xf32>
    %29 = arith.subf %20, %28 : vector<8x8xf32>
    %c0_23 = arith.constant 0 : index
    %c0_24 = arith.constant 0 : index
    %c0_25 = arith.constant 0 : index
    %30 = vector.load %arg6[%c0_23, %c0_24, %c0_25] : memref<1x2x8xf32, #tpu.memory_space<vmem>>, vector<1x1x8xf32>
    %31 = vector.shape_cast %30 : vector<1x1x8xf32> to vector<1x8xf32>
    %32 = vector.shape_cast %27 : vector<1x8xf32> to vector<1x1x8xf32>
    tpu.vector_store %arg6[%c0_23, %c0_24, %c0_25], %32 {strides = array<i32>} : memref<1x2x8xf32, #tpu.memory_space<vmem>>, vector<1x1x8xf32>,
    %33 = arith.mulf %29, %29 : vector<8x8xf32>
    %cst_26 = arith.constant dense<0.000000e+00> : vector<8xf32>
    %34 = vector.multi_reduction <add>, %33, %cst_26 [0] : vector<8x8xf32> to vector<8xf32>
    %35 = vector.shape_cast %34 : vector<8xf32> to vector<1x8xf32>
    %c0_27 = arith.constant 0 : index
    %c1_28 = arith.constant 1 : index
    %c0_29 = arith.constant 0 : index
    %36 = vector.load %arg6[%c0_27, %c1_28, %c0_29] : memref<1x2x8xf32, #tpu.memory_space<vmem>>, vector<1x1x8xf32>
    %37 = vector.shape_cast %36 : vector<1x1x8xf32> to vector<1x8xf32>
    %38 = vector.shape_cast %35 : vector<1x8xf32> to vector<1x1x8xf32>
    tpu.vector_store %arg6[%c0_27, %c1_28, %c0_29], %38 {strides = array<i32>} : memref<1x2x8xf32, #tpu.memory_space<vmem>>, vector<1x1x8xf32>,
    return
  }
  func.func @transform_0(%arg0: i32) -> (i32, i32, i32) {
    %c0_i32 = arith.constant 0 : i32
    %c0_i32_0 = arith.constant 0 : i32
    %c0_i32_1 = arith.constant 0 : i32
    return %arg0, %c0_i32, %c0_i32_0 : i32, i32, i32
  }
  func.func @transform_1(%arg0: i32) -> (i32, i32) {
    %c0_i32 = arith.constant 0 : i32
    %c0_i32_0 = arith.constant 0 : i32
    %c0_i32_1 = arith.constant 0 : i32
    return %c0_i32, %c0_i32_0 : i32, i32
  }
  func.func @transform_2(%arg0: i32) -> (i32, i32) {
    %c0_i32 = arith.constant 0 : i32
    %c0_i32_0 = arith.constant 0 : i32
    %c0_i32_1 = arith.constant 0 : i32
    return %c0_i32, %c0_i32_0 : i32, i32
  }
  func.func @transform_3(%arg0: i32) -> (i32, i32) {
    %c0_i32 = arith.constant 0 : i32
    %c0_i32_0 = arith.constant 0 : i32
    %c0_i32_1 = arith.constant 0 : i32
    return %c0_i32, %c0_i32_0 : i32, i32
  }
  func.func @transform_4(%arg0: i32) -> (i32, i32, i32) {
    %c0_i32 = arith.constant 0 : i32
    %c0_i32_0 = arith.constant 0 : i32
    %c0_i32_1 = arith.constant 0 : i32
    return %arg0, %c0_i32, %c0_i32_0 : i32, i32, i32
  }
  func.func @transform_5(%arg0: i32) -> (i32, i32, i32) {
    %c0_i32 = arith.constant 0 : i32
    %c0_i32_0 = arith.constant 0 : i32
    %c0_i32_1 = arith.constant 0 : i32
    return %arg0, %c0_i32, %c0_i32_0 : i32, i32, i32
  }
}

module attributes {stable_mosaic.version = 11 : i64} {
  func.func @kernel(%arg0: i32, %arg1: memref<1x8x8xf32, #tpu.memory_space<vmem>>, %arg2: memref<1x8x8xf32, #tpu.memory_space<vmem>>, %arg3: memref<1x8xf32, #tpu.memory_space<vmem>>, %arg4: memref<1x8xf32, #tpu.memory_space<vmem>>, %arg5: memref<1x8xf32, #tpu.memory_space<vmem>>, %arg6: memref<1x8xf32, #tpu.memory_space<vmem>>, %arg7: memref<1x8x8xf32, #tpu.memory_space<vmem>>) attributes {dimension_semantics = [#tpu.dimension_semantics<parallel>], iteration_bounds = array<i64: 2>, scalar_prefetch = 0 : i64, scratch_operands = 0 : i64, tpu.core_type = #tpu.core_type<tc>, window_params = [{transform_indices = @transform_0, window_bounds = array<i64: 1, 8, 8>}, {transform_indices = @transform_1, window_bounds = array<i64: 1, 8, 8>}, {pipeline_mode = #tpu.pipeline_mode<synchronous>, transform_indices = @transform_2, window_bounds = array<i64: 1, 8>}, {pipeline_mode = #tpu.pipeline_mode<synchronous>, transform_indices = @transform_3, window_bounds = array<i64: 1, 8>}, {pipeline_mode = #tpu.pipeline_mode<synchronous>, transform_indices = @transform_4, window_bounds = array<i64: 1, 8>}, {pipeline_mode = #tpu.pipeline_mode<synchronous>, transform_indices = @transform_5, window_bounds = array<i64: 1, 8>}, {transform_indices = @transform_6, window_bounds = array<i64: 1, 8, 8>}]} {
    %c0 = arith.constant 0 : index
    %c0_0 = arith.constant 0 : index
    %c0_1 = arith.constant 0 : index
    %0 = vector.load %arg1[%c0, %c0_0, %c0_1] : memref<1x8x8xf32, #tpu.memory_space<vmem>>, vector<1x8x8xf32>
    %1 = vector.shape_cast %0 : vector<1x8x8xf32> to vector<8x8xf32>
    %c0_2 = arith.constant 0 : index
    %c0_3 = arith.constant 0 : index
    %2 = vector.load %arg3[%c0_2, %c0_3] : memref<1x8xf32, #tpu.memory_space<vmem>>, vector<1x8xf32>
    %3 = vector.broadcast %2 : vector<1x8xf32> to vector<8x8xf32>
    %4 = arith.mulf %1, %3 : vector<8x8xf32>
    %c0_4 = arith.constant 0 : index
    %c0_5 = arith.constant 0 : index
    %5 = vector.load %arg4[%c0_4, %c0_5] : memref<1x8xf32, #tpu.memory_space<vmem>>, vector<1x8xf32>
    %6 = vector.broadcast %5 : vector<1x8xf32> to vector<8x8xf32>
    %7 = arith.addf %4, %6 : vector<8x8xf32>
    %c0_6 = arith.constant 0 : index
    %c0_7 = arith.constant 0 : index
    %c0_8 = arith.constant 0 : index
    %8 = vector.load %arg2[%c0_6, %c0_7, %c0_8] : memref<1x8x8xf32, #tpu.memory_space<vmem>>, vector<1x8x8xf32>
    %9 = vector.shape_cast %8 : vector<1x8x8xf32> to vector<8x8xf32>
    %c0_9 = arith.constant 0 : index
    %c0_10 = arith.constant 0 : index
    %10 = vector.load %arg5[%c0_9, %c0_10] : memref<1x8xf32, #tpu.memory_space<vmem>>, vector<1x8xf32>
    %11 = vector.broadcast %10 : vector<1x8xf32> to vector<8x8xf32>
    %12 = arith.mulf %9, %11 : vector<8x8xf32>
    %13 = arith.addf %7, %12 : vector<8x8xf32>
    %c0_11 = arith.constant 0 : index
    %c0_12 = arith.constant 0 : index
    %14 = vector.load %arg6[%c0_11, %c0_12] : memref<1x8xf32, #tpu.memory_space<vmem>>, vector<1x8xf32>
    %15 = vector.broadcast %14 : vector<1x8xf32> to vector<8x8xf32>
    %16 = arith.addf %13, %15 : vector<8x8xf32>
    %cst = arith.constant 0.000000e+00 : f32
    %17 = vector.broadcast %cst : f32 to vector<8x8xf32>
    %18 = arith.maximumf %16, %17 : vector<8x8xf32>
    %c0_13 = arith.constant 0 : index
    %c0_14 = arith.constant 0 : index
    %c0_15 = arith.constant 0 : index
    %19 = vector.load %arg7[%c0_13, %c0_14, %c0_15] : memref<1x8x8xf32, #tpu.memory_space<vmem>>, vector<1x8x8xf32>
    %20 = vector.shape_cast %19 : vector<1x8x8xf32> to vector<8x8xf32>
    %21 = vector.shape_cast %18 : vector<8x8xf32> to vector<1x8x8xf32>
    tpu.vector_store %arg7[%c0_13, %c0_14, %c0_15], %21 {strides = array<i32>} : memref<1x8x8xf32, #tpu.memory_space<vmem>>, vector<1x8x8xf32>,
    return
  }
  func.func @transform_0(%arg0: i32) -> (i32, i32, i32) {
    %c0_i32 = arith.constant 0 : i32
    %c0_i32_0 = arith.constant 0 : i32
    %c0_i32_1 = arith.constant 0 : i32
    return %arg0, %c0_i32, %c0_i32_0 : i32, i32, i32
  }
  func.func @transform_1(%arg0: i32) -> (i32, i32, i32) {
    %c0_i32 = arith.constant 0 : i32
    %c0_i32_0 = arith.constant 0 : i32
    %c0_i32_1 = arith.constant 0 : i32
    return %arg0, %c0_i32, %c0_i32_0 : i32, i32, i32
  }
  func.func @transform_2(%arg0: i32) -> (i32, i32) {
    %c0_i32 = arith.constant 0 : i32
    %c0_i32_0 = arith.constant 0 : i32
    %c0_i32_1 = arith.constant 0 : i32
    return %c0_i32, %c0_i32_0 : i32, i32
  }
  func.func @transform_3(%arg0: i32) -> (i32, i32) {
    %c0_i32 = arith.constant 0 : i32
    %c0_i32_0 = arith.constant 0 : i32
    %c0_i32_1 = arith.constant 0 : i32
    return %c0_i32, %c0_i32_0 : i32, i32
  }
  func.func @transform_4(%arg0: i32) -> (i32, i32) {
    %c0_i32 = arith.constant 0 : i32
    %c0_i32_0 = arith.constant 0 : i32
    %c0_i32_1 = arith.constant 0 : i32
    return %c0_i32, %c0_i32_0 : i32, i32
  }
  func.func @transform_5(%arg0: i32) -> (i32, i32) {
    %c0_i32 = arith.constant 0 : i32
    %c0_i32_0 = arith.constant 0 : i32
    %c0_i32_1 = arith.constant 0 : i32
    return %c0_i32, %c0_i32_0 : i32, i32
  }
  func.func @transform_6(%arg0: i32) -> (i32, i32, i32) {
    %c0_i32 = arith.constant 0 : i32
    %c0_i32_0 = arith.constant 0 : i32
    %c0_i32_1 = arith.constant 0 : i32
    return %arg0, %c0_i32, %c0_i32_0 : i32, i32, i32
  }
}

</mosaic_0001>

<llo_original>
// kernel: residual_block_forward.4
$region0: #{residual_block_forward.4}
  #allocation0 [shape = 'u32[]', space=smem, size = 0x4, offset = 0x4, fixed_abs, tag = 'smem constant byte address 0x4 - core index']
  #allocation1 [shape = 'u32[144,128]{1,0:T(1,128)}', space=vmem, size = 0x12000, scoped, tag = 'internal scratch']
  #allocation2 [shape = 'f32[8,24]{1,0:T(8,128)}', space=vmem, size = 0x1000, scoped, tag = 'scratch operand']
  %s0 = inlined_call_operand.vmem [shape: f32[2,8,8], index: 0, kind: input, shape index: {}]
  %s1 = inlined_call_operand.vmem [shape: f32[1,8], index: 1, kind: input, shape index: {}]
  %s2 = inlined_call_operand.vmem [shape: f32[1,8], index: 2, kind: input, shape index: {}]
  %s3 = inlined_call_operand.vmem [shape: f32[24,8], index: 3, kind: input, shape index: {}]
  %s4 = inlined_call_operand.vmem [shape: f32[2,8,8], index: 4, kind: output, shape index: {0}]
  %s5 = inlined_call_operand.vmem [shape: f32[2,2,8], index: 5, kind: output, shape index: {1}]
  %6 = xla_tuple %s4, %s5
  %s7 = sld [smem:[#allocation0]]
  $region57: #{residual_block_forward.4} parent=0
    _
  %s9 = ssub.s32 1, %s7
  %s10 = scalar_select 0, %s9, %s7
  loop: start=0, step=1, limit=4
  $region2: #{residual_block_forward.4} parent=0 // loop_pre_header
    _
  $region3: #{residual_block_forward.4} parent=0 // loop_header
    %s12 = sphi 0, %s16
    %p13 = scmp.ge.s32.totalorder %s12, 4
    %s22 = sphi 0, %s24
    %s25 = sphi 0, %s22
    %s26 = sphi 0, %s25
    %s42 = sphi 0, %s26
    %s46 = sphi 0, %s46
    %s48 = sphi 0, %s46
    %s49 = sphi 0, %s48
    %s63 = sphi 0, %s49
    %s67 = sphi 0, %s67
    %s69 = sphi 0, %s67
    %s70 = sphi 0, %s69
    %s84 = sphi 0, %s70
    %s88 = sphi 0, %s88
    %s90 = sphi 0, %s88
    %s91 = sphi 0, %s90
    %s105 = sphi 0, %s91
    %s111 = sphi 0, %s113
    %s114 = sphi 0, %s111
    %s115 = sphi 0, %s114
    %s131 = sphi 0, %s115
    %s137 = sphi 0, %s139
    %s140 = sphi 0, %s137
    %s141 = sphi 0, %s140
    %s157 = sphi 0, %s141
  $region4: #{residual_block_forward.4} parent=0 // loop_header_branch
    %15 = sbr.rel (%p13) target = $region8
  $region5: #{residual_block_forward.4} parent=0 // loop_body
    %s17 = ssub.s32 %s12, 1
    %s18 = ssub.s32 %s12, 2
    %s19 = sadd.s32 %s12, 1
    %s20 = ssub.s32 %s12, %s19
    %p21 = scmp.eq.s32.totalorder %s20, 0
    %s23 = sadd.s32 %s22, 1
    %s24 = scalar_select %p21, %s22, %s23
    %p27 = pneg %p21
    %p28 = scmp.eq.s32.totalorder %s12, 1
    %p29 = por %p27, %p28
    %p30 = scmp.ne.s32.totalorder %s22, %s25
    %p31 = scmp.eq.s32.totalorder %s12, 0
    %p32 = por %p30, %p31
    %p33 = scmp.ne.s32.totalorder %s22, %s25
    %p34 = scmp.eq.s32.totalorder %s17, 1
    %p35 = por %p33, %p34
    %p36 = scmp.ne.s32.totalorder %s25, %s26
    %p37 = scmp.eq.s32.totalorder %s17, 0
    %p38 = por %p36, %p37
    %p39 = scmp.ne.s32.totalorder %s25, %s26
    %p40 = scmp.eq.s32.totalorder %s18, 1
    %p41 = por %p39, %p40
    %p43 = scmp.ne.s32.totalorder %s26, %s42
    %p44 = scmp.eq.s32.totalorder %s18, 0
    %p45 = por %p43, %p44
    %s47 = sadd.s32 %s46, 1
    %p50 = scmp.eq.s32.totalorder %s12, 1
    %p51 = scmp.ne.s32.totalorder %s46, %s48
    %p52 = scmp.eq.s32.totalorder %s12, 0
    %p53 = por %p51, %p52
    %p54 = scmp.ne.s32.totalorder %s46, %s48
    %p55 = scmp.eq.s32.totalorder %s17, 1
    %p56 = por %p54, %p55
    %p57 = scmp.ne.s32.totalorder %s48, %s49
    %p58 = scmp.eq.s32.totalorder %s17, 0
    %p59 = por %p57, %p58
    %p60 = scmp.ne.s32.totalorder %s48, %s49
    %p61 = scmp.eq.s32.totalorder %s18, 1
    %p62 = por %p60, %p61
    %p64 = scmp.ne.s32.totalorder %s49, %s63
    %p65 = scmp.eq.s32.totalorder %s18, 0
    %p66 = por %p64, %p65
    %s68 = sadd.s32 %s67, 1
    %p71 = scmp.eq.s32.totalorder %s12, 1
    %p72 = scmp.ne.s32.totalorder %s67, %s69
    %p73 = scmp.eq.s32.totalorder %s12, 0
    %p74 = por %p72, %p73
    %p75 = scmp.ne.s32.totalorder %s67, %s69
    %p76 = scmp.eq.s32.totalorder %s17, 1
    %p77 = por %p75, %p76
    %p78 = scmp.ne.s32.totalorder %s69, %s70
    %p79 = scmp.eq.s32.totalorder %s17, 0
    %p80 = por %p78, %p79
    %p81 = scmp.ne.s32.totalorder %s69, %s70
    %p82 = scmp.eq.s32.totalorder %s18, 1
    %p83 = por %p81, %p82
    %p85 = scmp.ne.s32.totalorder %s70, %s84
    %p86 = scmp.eq.s32.totalorder %s18, 0
    %p87 = por %p85, %p86
    %s89 = sadd.s32 %s88, 1
    %p92 = scmp.eq.s32.totalorder %s12, 1
    %p93 = scmp.ne.s32.totalorder %s88, %s90
    %p94 = scmp.eq.s32.totalorder %s12, 0
    %p95 = por %p93, %p94
    %p96 = scmp.ne.s32.totalorder %s88, %s90
    %p97 = scmp.eq.s32.totalorder %s17, 1
    %p98 = por %p96, %p97
    %p99 = scmp.ne.s32.totalorder %s90, %s91
    %p100 = scmp.eq.s32.totalorder %s17, 0
    %p101 = por %p99, %p100
    %p102 = scmp.ne.s32.totalorder %s90, %s91
    %p103 = scmp.eq.s32.totalorder %s18, 1
    %p104 = por %p102, %p103
    %p106 = scmp.ne.s32.totalorder %s91, %s105
    %p107 = scmp.eq.s32.totalorder %s18, 0
    %p108 = por %p106, %p107
    %s109 = ssub.s32 %s12, %s19
    %p110 = scmp.eq.s32.totalorder %s109, 0
    %s112 = sadd.s32 %s111, 1
    %s113 = scalar_select %p110, %s111, %s112
    %p116 = pneg %p110
    %p117 = scmp.eq.s32.totalorder %s12, 1
    %p118 = por %p116, %p117
    %p119 = scmp.ne.s32.totalorder %s111, %s114
    %p120 = scmp.eq.s32.totalorder %s12, 0
    %p121 = por %p119, %p120
    %p122 = scmp.ne.s32.totalorder %s111, %s114
    %p123 = scmp.eq.s32.totalorder %s17, 1
    %p124 = por %p122, %p123
    %p125 = scmp.ne.s32.totalorder %s114, %s115
    %p126 = scmp.eq.s32.totalorder %s17, 0
    %p127 = por %p125, %p126
    %p128 = scmp.ne.s32.totalorder %s114, %s115
    %p129 = scmp.eq.s32.totalorder %s18, 1
    %p130 = por %p128, %p129
    %p132 = scmp.ne.s32.totalorder %s115, %s131
    %p133 = scmp.eq.s32.totalorder %s18, 0
    %p134 = por %p132, %p133
    %s135 = ssub.s32 %s12, %s19
    %p136 = scmp.eq.s32.totalorder %s135, 0
    %s138 = sadd.s32 %s137, 1
    %s139 = scalar_select %p136, %s137, %s138
    %p142 = pneg %p136
    %p143 = scmp.eq.s32.totalorder %s12, 1
    %p144 = por %p142, %p143
    %p145 = scmp.ne.s32.totalorder %s137, %s140
    %p146 = scmp.eq.s32.totalorder %s12, 0
    %p147 = por %p145, %p146
    %p148 = scmp.ne.s32.totalorder %s137, %s140
    %p149 = scmp.eq.s32.totalorder %s17, 1
    %p150 = por %p148, %p149
    %p151 = scmp.ne.s32.totalorder %s140, %s141
    %p152 = scmp.eq.s32.totalorder %s17, 0
    %p153 = por %p151, %p152
    %p154 = scmp.ne.s32.totalorder %s140, %s141
    %p155 = scmp.eq.s32.totalorder %s18, 1
    %p156 = por %p154, %p155
    %p158 = scmp.ne.s32.totalorder %s141, %s157
    %p159 = scmp.eq.s32.totalorder %s18, 0
    %p160 = por %p158, %p159
    %p161 = scmp.le.s32.totalorder 1, %s12
    %p162 = scmp.lt.s32.totalorder %s12, 3
    %p163 = pnand %p161, %p162
    %p164 = pneg %p163
    // Predicated region
    $region9: #{residual_block_forward.4} parent=5 // pred_check
      _
    $region10: #{residual_block_forward.4} parent=5 // pred_check_branch
      %166 = sbr.rel (%p163) target = $region12
    $region11: #{residual_block_forward.4} parent=5 // pred_region
      %s167 = ssub.s32 %s12, 1
      // Predicated region
      $region13: #{residual_block_forward.4} parent=11 // pred_check
        %p168 = pneg %p59
      $region14: #{residual_block_forward.4} parent=11 // pred_check_branch
        %170 = sbr.rel (%p168) target = $region16
      $region15: #{residual_block_forward.4} parent=11 // pred_region
        _
      $region16: #{residual_block_forward.4} parent=11 // pred_fallthru
        _
      // Predicated region
      $region17: #{residual_block_forward.4} parent=11 // pred_check
        %p171 = pneg %p80
      $region18: #{residual_block_forward.4} parent=11 // pred_check_branch
        %173 = sbr.rel (%p171) target = $region20
      $region19: #{residual_block_forward.4} parent=11 // pred_region
        _
      $region20: #{residual_block_forward.4} parent=11 // pred_fallthru
        _
      // Predicated region
      $region21: #{residual_block_forward.4} parent=11 // pred_check
        %p174 = pneg %p101
      $region22: #{residual_block_forward.4} parent=11 // pred_check_branch
        %176 = sbr.rel (%p174) target = $region24
      $region23: #{residual_block_forward.4} parent=11 // pred_region
        _
      $region24: #{residual_block_forward.4} parent=11 // pred_fallthru
        _
    $region12: #{residual_block_forward.4} parent=5 // pred_fallthru
      _
    %p177 = scmp.lt.s32.totalorder %s12, 2
    // Predicated region
    $region25: #{residual_block_forward.4} parent=5 // pred_check
      %p178 = pneg %p177
    $region26: #{residual_block_forward.4} parent=5 // pred_check_branch
      %180 = sbr.rel (%p178) target = $region28
    $region27: #{residual_block_forward.4} parent=5 // pred_region
      // Predicated region
      $region29: #{residual_block_forward.4} parent=27 // pred_check
        %p181 = pneg %p32
      $region30: #{residual_block_forward.4} parent=27 // pred_check_branch
        %183 = sbr.rel (%p181) target = $region32
      $region31: #{residual_block_forward.4} parent=27 // pred_region
        %p184 = scmp.lt.s32.totalorder %s12, 1
        %s185 = scalar_select %p184, %s12, 1
        %s186 = smul.addr %s185, 8
        %s187 = scalar_lea.vmem %s0, %s186
      $region32: #{residual_block_forward.4} parent=27 // pred_fallthru
        _
    $region28: #{residual_block_forward.4} parent=5 // pred_fallthru
      _
    %p188 = scmp.le.s32.totalorder 1, %s12
    %p189 = scmp.lt.s32.totalorder %s12, 3
    %p190 = pnand %p188, %p189
    %p191 = pneg %p190
    // Predicated region
    $region33: #{residual_block_forward.4} parent=5 // pred_check
      _
    $region34: #{residual_block_forward.4} parent=5 // pred_check_branch
      %193 = sbr.rel (%p190) target = $region36
    $region35: #{residual_block_forward.4} parent=5 // pred_region
      %s194 = ssub.s32 %s12, 1
      %p195 = scmp.lt.s32.totalorder %s17, 1
      %s196 = scalar_select %p195, %s17, 1
      %s197 = smul.addr %s196, 8
      %s198 = scalar_lea.vmem %s0, %s197
      %p199 = pneg %p38
      %p200 = pneg %p35
      %p201 = pneg %p59
      %p202 = pneg %p56
      %p203 = pneg %p80
      %p204 = pneg %p77
      %p205 = pneg %p101
      %p206 = pneg %p98
      %p207 = pneg %p127
      %p208 = pneg %p124
      %p209 = scmp.lt.s32.totalorder %s17, 1
      %s210 = scalar_select %p209, %s17, 1
      %s211 = smul.addr %s210, 8
      %s212 = scalar_lea.vmem %s4, %s211
      %p213 = pneg %p153
      %p214 = pneg %p150
      %p215 = scmp.lt.s32.totalorder %s17, 1
      %s216 = scalar_select %p215, %s17, 1
      %s217 = smul.addr %s216, 2
      %s218 = scalar_lea.vmem %s5, %s217
      %p219 = scmp.lt.s32.totalorder %s17, 1
      %s220 = scalar_select %p219, %s17, 1
      %s221 = smul.addr %s220, 8
      %s222 = scalar_lea.vmem %s0, %s221
      %p223 = scmp.lt.s32.totalorder %s17, 1
      %s224 = scalar_select %p223, %s17, 1
      %s225 = smul.addr %s224, 8
      %s226 = scalar_lea.vmem %s4, %s225
      %p227 = scmp.lt.s32.totalorder %s17, 1
      %s228 = scalar_select %p227, %s17, 1
      %s229 = smul.addr %s228, 2
      %s230 = scalar_lea.vmem %s5, %s229
      %v231 = vld [vmem:[%s222] sm:$0xff]
      %v232 = vld [vmem:[%s1] sm:$0x1]
      %v234 = vlaneseq
      %v235 = vshrl.u32 %v234, 7
      %v236 = vsub.s32 0, %v235
      %v237 = vrot.slane %v232, %v236
      %v239 = vmul.f32 %v231, %v237
      %v240 = vld [vmem:[%s2] sm:$0x1]
      %v242 = vlaneseq
      %v243 = vshrl.u32 %v242, 7
      %v244 = vsub.s32 0, %v243
      %v245 = vrot.slane %v240, %v244
      %v247 = vadd.f32 %v239, %v245
      %v248 = vmax.f32 %v247, 0.0
      %vm249 = vcmask 57344
      %250 = vst.msk [vmem:[#allocation2] sm:$0x1] %vm249, 0.0
      %vm251 = vcmask 63488
      %252 = vst.msk [vmem:[#allocation2 + $0x1] sm:$0x7f] %vm251, %v248
      %254 = vrot.lane.b32.xlu0 %v248, 8
      %v255 = vpop.permute.xlu0 %254
      %vm257 = vcmask 130112
      %258 = vst.msk [vmem:[#allocation2] sm:$0xff] %vm257, %v255
      %259 = vrot.lane.b32.xlu0 %v248, 16
      %v260 = vpop.permute.xlu0 %259
      %vm262 = vcmask 195713
      %263 = vst.msk [vmem:[#allocation2 - $0x1] sm:$0xfe] %vm262, %v260
      %vm264 = vcmask 188544
      %265 = vst.msk [vmem:[#allocation2 + $0x7] sm:$0x1] %vm264, 0.0
      %v266 = vld [vmem:[#allocation2] sm:$0xff]
      %v267 = vld [vmem:[%s3] sm:$0xff]
      %v268 = vld [vmem:[%s3 + $0x8] sm:$0xff]
      %v269 = vld [vmem:[%s3 + $0x10] sm:$0xff]
      %vm270 = vcmask 195584
      %v272 = vsel %vm270, %v266, 0
      %274 = vmatprep.subr.mxu0 0.0
      %275 = vmatpush1.msra.mxu0 0.0
      %276 = vmatprep.subr.mxu0 0.0
      %277 = vmatpush1.msra.mxu0 0.0
      %278 = vmatprep.subr.mxu0 0.0
      %279 = vmatpush1.msra.mxu0 0.0
      %280 = vmatprep.subr.mxu0 0.0
      %281 = vmatpush1.msra.mxu0 0.0
      %282 = vmatprep.subr.mxu0 0.0
      %283 = vmatpush1.msra.mxu0 0.0
      %284 = vmatprep.subr.mxu0 0.0
      %285 = vmatpush1.msra.mxu0 0.0
      %286 = vmatprep.subr.mxu0 0.0
      %287 = vmatpush1.msra.mxu0 0.0
      %288 = vmatprep.subr.mxu0 0.0
      %289 = vmatpush1.msra.mxu0 0.0
      %290 = vmatprep.subr.mxu0 0.0
      %291 = vmatpush1.msra.mxu0 0.0
      %292 = vmatprep.subr.mxu0 0.0
      %293 = vmatpush1.msra.mxu0 0.0
      %294 = vmatprep.subr.mxu0 0.0
      %295 = vmatpush1.msra.mxu0 0.0
      %296 = vmatprep.subr.mxu0 0.0
      %297 = vmatpush1.msra.mxu0 0.0
      %298 = vmatprep.subr.mxu0 0.0
      %299 = vmatpush1.msra.mxu0 0.0
      %300 = vmatprep.subr.mxu0 0.0
      %301 = vmatpush1.msra.mxu0 %v269
      %302 = vmatprep.subr.mxu0 0.0
      %303 = vmatpush1.msra.mxu0 %v268
      %304 = vmatprep.subr.mxu0 0.0
      %305 = vmatpush1.msra.mxu0 %v267
      %306 = vmatprep.subr.mxu0 0.0
      %307 = vmatpush2.msra.mxu0 0.0
      %308 = vmatprep.subr.mxu0 0.0
      %309 = vmatpush2.msra.mxu0 0.0
      %310 = vmatprep.subr.mxu0 0.0
      %311 = vmatpush2.msra.mxu0 0.0
      %312 = vmatprep.subr.mxu0 0.0
      %313 = vmatpush2.msra.mxu0 0.0
      %314 = vmatprep.subr.mxu0 0.0
      %315 = vmatpush2.msra.mxu0 0.0
      %316 = vmatprep.subr.mxu0 0.0
      %317 = vmatpush2.msra.mxu0 0.0
      %318 = vmatprep.subr.mxu0 0.0
      %319 = vmatpush2.msra.mxu0 0.0
      %320 = vmatprep.subr.mxu0 0.0
      %321 = vmatpush2.msra.mxu0 0.0
      %322 = vmatprep.subr.mxu0 0.0
      %323 = vmatpush2.msra.mxu0 0.0
      %324 = vmatprep.subr.mxu0 0.0
      %325 = vmatpush2.msra.mxu0 0.0
      %326 = vmatprep.subr.mxu0 0.0
      %327 = vmatpush2.msra.mxu0 0.0
      %328 = vmatprep.subr.mxu0 0.0
      %329 = vmatpush2.msra.mxu0 0.0
      %330 = vmatprep.subr.mxu0 0.0
      %331 = vmatpush2.msra.mxu0 0.0
      %332 = vmatprep.subr.mxu0 0.0
      %333 = vmatpush2.msra.mxu0 0.0
      %334 = vmatprep.subr.mxu0 0.0
      %335 = vmatpush2.msra.mxu0 0.0
      %336 = vmatprep.subr.mxu0 0.0
      %337 = vmatpush2.msra.mxu0 0.0
      %338 = vmatprep.mubr.f32.mxu0 0.0
      %339 = vmatmul.mubr.f32.gmra.mxu0 %v272
      %v340 = vpop.f32.mrf.mxu0
      %v341 = vadd.f32 0.0, %v340
      %v342 = vpop.f32.mrf.mxu0
      %343 = vdwg.mxu0
      %vm344 = vcmask 64512
      %345 = vst.msk [vmem:[%s226] sm:$0xff] %vm344, %v341
      %v346 = vsel %vm344, %v341, 0.0
      %v347 = vrot.slane %v346, 4
      %v348 = vadd.f32 %v346, %v347
      %v349 = vrot.slane %v348, 2
      %v350 = vadd.f32 %v348, %v349
      %v351 = vrot.slane %v350, 1
      %v352 = vadd.f32 %v350, %v351
      %v353 = vrcp.pop 8.0
      %v354 = vmul.f32 %v352, %v353
      %v355 = vsub.f32 %v341, %v354
      %356 = vst.msk [vmem:[%s230] sm:$0x1] %vm249, %v354
      %v357 = vmul.f32 %v355, %v355
      %v358 = vsel %vm344, %v357, 0.0
      %v359 = vrot.slane %v358, 4
      %v360 = vadd.f32 %v358, %v359
      %v361 = vrot.slane %v360, 2
      %v362 = vadd.f32 %v360, %v361
      %v363 = vrot.slane %v362, 1
      %v364 = vadd.f32 %v362, %v363
      %365 = vst.msk [vmem:[%s230 + $0x1] sm:$0x1] %vm249, %v364
      %p366 = scmp.lt.s32.totalorder %s17, 1
      %s367 = scalar_select %p366, %s17, 1
      %s368 = smul.addr %s367, 8
      %s369 = scalar_lea.vmem %s4, %s368
      %p370 = scmp.lt.s32.totalorder %s17, 1
      %s371 = scalar_select %p370, %s17, 1
      %s372 = smul.addr %s371, 2
      %s373 = scalar_lea.vmem %s5, %s372
      // Predicated region
      $region37: #{residual_block_forward.4} parent=35 // pred_check
        %p374 = pneg %p124
      $region38: #{residual_block_forward.4} parent=35 // pred_check_branch
        %376 = sbr.rel (%p374) target = $region40
      $region39: #{residual_block_forward.4} parent=35 // pred_region
        _
      $region40: #{residual_block_forward.4} parent=35 // pred_fallthru
        _
      // Predicated region
      $region41: #{residual_block_forward.4} parent=35 // pred_check
        %p377 = pneg %p150
      $region42: #{residual_block_forward.4} parent=35 // pred_check_branch
        %379 = sbr.rel (%p377) target = $region44
      $region43: #{residual_block_forward.4} parent=35 // pred_region
        _
      $region44: #{residual_block_forward.4} parent=35 // pred_fallthru
        _
    $region36: #{residual_block_forward.4} parent=5 // pred_fallthru
      _
    %p380 = scmp.le.s32.totalorder 2, %s12
    // Predicated region
    $region45: #{residual_block_forward.4} parent=5 // pred_check
      %p381 = pneg %p380
    $region46: #{residual_block_forward.4} parent=5 // pred_check_branch
      %383 = sbr.rel (%p381) target = $region48
    $region47: #{residual_block_forward.4} parent=5 // pred_region
      %s384 = ssub.s32 %s12, 2
      // Predicated region
      $region49: #{residual_block_forward.4} parent=47 // pred_check
        %p385 = pneg %p130
      $region50: #{residual_block_forward.4} parent=47 // pred_check_branch
        %387 = sbr.rel (%p385) target = $region52
      $region51: #{residual_block_forward.4} parent=47 // pred_region
        %p388 = scmp.lt.s32.totalorder %s18, 1
        %s389 = scalar_select %p388, %s18, 1
        %s390 = smul.addr %s389, 8
        %s391 = scalar_lea.vmem %s4, %s390
      $region52: #{residual_block_forward.4} parent=47 // pred_fallthru
        _
      // Predicated region
      $region53: #{residual_block_forward.4} parent=47 // pred_check
        %p392 = pneg %p156
      $region54: #{residual_block_forward.4} parent=47 // pred_check_branch
        %394 = sbr.rel (%p392) target = $region56
      $region55: #{residual_block_forward.4} parent=47 // pred_region
        %p395 = scmp.lt.s32.totalorder %s18, 1
        %s396 = scalar_select %p395, %s18, 1
        %s397 = smul.addr %s396, 2
        %s398 = scalar_lea.vmem %s5, %s397
      $region56: #{residual_block_forward.4} parent=47 // pred_fallthru
        _
    $region48: #{residual_block_forward.4} parent=5 // pred_fallthru
      _
  $region6: #{residual_block_forward.4} parent=0 // loop_footer
    %s16 = sadd.s32 1, %s12
  $region7: #{residual_block_forward.4} parent=0 // loop_footer_branch
    %11 = sbr.rel target = $region3
  $region8: #{residual_block_forward.4} parent=0 // loop_exit
    _

// kernel: residual_block_forward.3
$region0: #{residual_block_forward.3}
  #allocation0 [shape = 'u32[]', space=smem, size = 0x4, offset = 0x4, fixed_abs, tag = 'smem constant byte address 0x4 - core index']
  #allocation1 [shape = 'u32[144,128]{1,0:T(1,128)}', space=vmem, size = 0x12000, scoped, tag = 'internal scratch']
  #allocation2 [shape = 'f32[8,12]{1,0:T(8,128)}', space=vmem, size = 0x1000, scoped, tag = 'scratch operand']
  %s0 = inlined_call_operand.vmem [shape: f32[2,18,4], index: 0, kind: input, shape index: {}]
  %s1 = inlined_call_operand.vmem [shape: f32[12,8], index: 1, kind: input, shape index: {}]
  %s2 = inlined_call_operand.vmem [shape: f32[4,8], index: 2, kind: input, shape index: {}]
  %s3 = inlined_call_operand.vmem [shape: f32[2,8,8], index: 3, kind: output, shape index: {0}]
  %s4 = inlined_call_operand.vmem [shape: f32[2,2,8], index: 4, kind: output, shape index: {1}]
  %s5 = inlined_call_operand.vmem [shape: f32[2,8,8], index: 5, kind: output, shape index: {2}]
  %s6 = inlined_call_operand.vmem [shape: f32[2,2,8], index: 6, kind: output, shape index: {3}]
  %7 = xla_tuple %s3, %s4, %s5, %s6
  %s8 = sld [smem:[#allocation0]]
  $region69: #{residual_block_forward.3} parent=0
    _
  %s10 = ssub.s32 1, %s8
  %s11 = scalar_select 0, %s10, %s8
  loop: start=0, step=1, limit=4
  $region2: #{residual_block_forward.3} parent=0 // loop_pre_header
    _
  $region3: #{residual_block_forward.3} parent=0 // loop_header
    %s13 = sphi 0, %s17
    %p14 = scmp.ge.s32.totalorder %s13, 4
    %s23 = sphi 0, %s25
    %s26 = sphi 0, %s23
    %s27 = sphi 0, %s26
    %s43 = sphi 0, %s27
    %s47 = sphi 0, %s47
    %s49 = sphi 0, %s47
    %s50 = sphi 0, %s49
    %s64 = sphi 0, %s50
    %s68 = sphi 0, %s68
    %s70 = sphi 0, %s68
    %s71 = sphi 0, %s70
    %s85 = sphi 0, %s71
    %s91 = sphi 0, %s93
    %s94 = sphi 0, %s91
    %s95 = sphi 0, %s94
    %s111 = sphi 0, %s95
    %s117 = sphi 0, %s119
    %s120 = sphi 0, %s117
    %s121 = sphi 0, %s120
    %s137 = sphi 0, %s121
    %s143 = sphi 0, %s145
    %s146 = sphi 0, %s143
    %s147 = sphi 0, %s146
    %s163 = sphi 0, %s147
    %s169 = sphi 0, %s171
    %s172 = sphi 0, %s169
    %s173 = sphi 0, %s172
    %s189 = sphi 0, %s173
  $region4: #{residual_block_forward.3} parent=0 // loop_header_branch
    %16 = sbr.rel (%p14) target = $region8
  $region5: #{residual_block_forward.3} parent=0 // loop_body
    %s18 = ssub.s32 %s13, 1
    %s19 = ssub.s32 %s13, 2
    %s20 = sadd.s32 %s13, 1
    %s21 = ssub.s32 %s13, %s20
    %p22 = scmp.eq.s32.totalorder %s21, 0
    %s24 = sadd.s32 %s23, 1
    %s25 = scalar_select %p22, %s23, %s24
    %p28 = pneg %p22
    %p29 = scmp.eq.s32.totalorder %s13, 1
    %p30 = por %p28, %p29
    %p31 = scmp.ne.s32.totalorder %s23, %s26
    %p32 = scmp.eq.s32.totalorder %s13, 0
    %p33 = por %p31, %p32
    %p34 = scmp.ne.s32.totalorder %s23, %s26
    %p35 = scmp.eq.s32.totalorder %s18, 1
    %p36 = por %p34, %p35
    %p37 = scmp.ne.s32.totalorder %s26, %s27
    %p38 = scmp.eq.s32.totalorder %s18, 0
    %p39 = por %p37, %p38
    %p40 = scmp.ne.s32.totalorder %s26, %s27
    %p41 = scmp.eq.s32.totalorder %s19, 1
    %p42 = por %p40, %p41
    %p44 = scmp.ne.s32.totalorder %s27, %s43
    %p45 = scmp.eq.s32.totalorder %s19, 0
    %p46 = por %p44, %p45
    %s48 = sadd.s32 %s47, 1
    %p51 = scmp.eq.s32.totalorder %s13, 1
    %p52 = scmp.ne.s32.totalorder %s47, %s49
    %p53 = scmp.eq.s32.totalorder %s13, 0
    %p54 = por %p52, %p53
    %p55 = scmp.ne.s32.totalorder %s47, %s49
    %p56 = scmp.eq.s32.totalorder %s18, 1
    %p57 = por %p55, %p56
    %p58 = scmp.ne.s32.totalorder %s49, %s50
    %p59 = scmp.eq.s32.totalorder %s18, 0
    %p60 = por %p58, %p59
    %p61 = scmp.ne.s32.totalorder %s49, %s50
    %p62 = scmp.eq.s32.totalorder %s19, 1
    %p63 = por %p61, %p62
    %p65 = scmp.ne.s32.totalorder %s50, %s64
    %p66 = scmp.eq.s32.totalorder %s19, 0
    %p67 = por %p65, %p66
    %s69 = sadd.s32 %s68, 1
    %p72 = scmp.eq.s32.totalorder %s13, 1
    %p73 = scmp.ne.s32.totalorder %s68, %s70
    %p74 = scmp.eq.s32.totalorder %s13, 0
    %p75 = por %p73, %p74
    %p76 = scmp.ne.s32.totalorder %s68, %s70
    %p77 = scmp.eq.s32.totalorder %s18, 1
    %p78 = por %p76, %p77
    %p79 = scmp.ne.s32.totalorder %s70, %s71
    %p80 = scmp.eq.s32.totalorder %s18, 0
    %p81 = por %p79, %p80
    %p82 = scmp.ne.s32.totalorder %s70, %s71
    %p83 = scmp.eq.s32.totalorder %s19, 1
    %p84 = por %p82, %p83
    %p86 = scmp.ne.s32.totalorder %s71, %s85
    %p87 = scmp.eq.s32.totalorder %s19, 0
    %p88 = por %p86, %p87
    %s89 = ssub.s32 %s13, %s20
    %p90 = scmp.eq.s32.totalorder %s89, 0
    %s92 = sadd.s32 %s91, 1
    %s93 = scalar_select %p90, %s91, %s92
    %p96 = pneg %p90
    %p97 = scmp.eq.s32.totalorder %s13, 1
    %p98 = por %p96, %p97
    %p99 = scmp.ne.s32.totalorder %s91, %s94
    %p100 = scmp.eq.s32.totalorder %s13, 0
    %p101 = por %p99, %p100
    %p102 = scmp.ne.s32.totalorder %s91, %s94
    %p103 = scmp.eq.s32.totalorder %s18, 1
    %p104 = por %p102, %p103
    %p105 = scmp.ne.s32.totalorder %s94, %s95
    %p106 = scmp.eq.s32.totalorder %s18, 0
    %p107 = por %p105, %p106
    %p108 = scmp.ne.s32.totalorder %s94, %s95
    %p109 = scmp.eq.s32.totalorder %s19, 1
    %p110 = por %p108, %p109
    %p112 = scmp.ne.s32.totalorder %s95, %s111
    %p113 = scmp.eq.s32.totalorder %s19, 0
    %p114 = por %p112, %p113
    %s115 = ssub.s32 %s13, %s20
    %p116 = scmp.eq.s32.totalorder %s115, 0
    %s118 = sadd.s32 %s117, 1
    %s119 = scalar_select %p116, %s117, %s118
    %p122 = pneg %p116
    %p123 = scmp.eq.s32.totalorder %s13, 1
    %p124 = por %p122, %p123
    %p125 = scmp.ne.s32.totalorder %s117, %s120
    %p126 = scmp.eq.s32.totalorder %s13, 0
    %p127 = por %p125, %p126
    %p128 = scmp.ne.s32.totalorder %s117, %s120
    %p129 = scmp.eq.s32.totalorder %s18, 1
    %p130 = por %p128, %p129
    %p131 = scmp.ne.s32.totalorder %s120, %s121
    %p132 = scmp.eq.s32.totalorder %s18, 0
    %p133 = por %p131, %p132
    %p134 = scmp.ne.s32.totalorder %s120, %s121
    %p135 = scmp.eq.s32.totalorder %s19, 1
    %p136 = por %p134, %p135
    %p138 = scmp.ne.s32.totalorder %s121, %s137
    %p139 = scmp.eq.s32.totalorder %s19, 0
    %p140 = por %p138, %p139
    %s141 = ssub.s32 %s13, %s20
    %p142 = scmp.eq.s32.totalorder %s141, 0
    %s144 = sadd.s32 %s143, 1
    %s145 = scalar_select %p142, %s143, %s144
    %p148 = pneg %p142
    %p149 = scmp.eq.s32.totalorder %s13, 1
    %p150 = por %p148, %p149
    %p151 = scmp.ne.s32.totalorder %s143, %s146
    %p152 = scmp.eq.s32.totalorder %s13, 0
    %p153 = por %p151, %p152
    %p154 = scmp.ne.s32.totalorder %s143, %s146
    %p155 = scmp.eq.s32.totalorder %s18, 1
    %p156 = por %p154, %p155
    %p157 = scmp.ne.s32.totalorder %s146, %s147
    %p158 = scmp.eq.s32.totalorder %s18, 0
    %p159 = por %p157, %p158
    %p160 = scmp.ne.s32.totalorder %s146, %s147
    %p161 = scmp.eq.s32.totalorder %s19, 1
    %p162 = por %p160, %p161
    %p164 = scmp.ne.s32.totalorder %s147, %s163
    %p165 = scmp.eq.s32.totalorder %s19, 0
    %p166 = por %p164, %p165
    %s167 = ssub.s32 %s13, %s20
    %p168 = scmp.eq.s32.totalorder %s167, 0
    %s170 = sadd.s32 %s169, 1
    %s171 = scalar_select %p168, %s169, %s170
    %p174 = pneg %p168
    %p175 = scmp.eq.s32.totalorder %s13, 1
    %p176 = por %p174, %p175
    %p177 = scmp.ne.s32.totalorder %s169, %s172
    %p178 = scmp.eq.s32.totalorder %s13, 0
    %p179 = por %p177, %p178
    %p180 = scmp.ne.s32.totalorder %s169, %s172
    %p181 = scmp.eq.s32.totalorder %s18, 1
    %p182 = por %p180, %p181
    %p183 = scmp.ne.s32.totalorder %s172, %s173
    %p184 = scmp.eq.s32.totalorder %s18, 0
    %p185 = por %p183, %p184
    %p186 = scmp.ne.s32.totalorder %s172, %s173
    %p187 = scmp.eq.s32.totalorder %s19, 1
    %p188 = por %p186, %p187
    %p190 = scmp.ne.s32.totalorder %s173, %s189
    %p191 = scmp.eq.s32.totalorder %s19, 0
    %p192 = por %p190, %p191
    %p193 = scmp.le.s32.totalorder 1, %s13
    %p194 = scmp.lt.s32.totalorder %s13, 3
    %p195 = pnand %p193, %p194
    %p196 = pneg %p195
    // Predicated region
    $region9: #{residual_block_forward.3} parent=5 // pred_check
      _
    $region10: #{residual_block_forward.3} parent=5 // pred_check_branch
      %198 = sbr.rel (%p195) target = $region12
    $region11: #{residual_block_forward.3} parent=5 // pred_region
      %s199 = ssub.s32 %s13, 1
      // Predicated region
      $region13: #{residual_block_forward.3} parent=11 // pred_check
        %p200 = pneg %p60
      $region14: #{residual_block_forward.3} parent=11 // pred_check_branch
        %202 = sbr.rel (%p200) target = $region16
      $region15: #{residual_block_forward.3} parent=11 // pred_region
        _
      $region16: #{residual_block_forward.3} parent=11 // pred_fallthru
        _
      // Predicated region
      $region17: #{residual_block_forward.3} parent=11 // pred_check
        %p203 = pneg %p81
      $region18: #{residual_block_forward.3} parent=11 // pred_check_branch
        %205 = sbr.rel (%p203) target = $region20
      $region19: #{residual_block_forward.3} parent=11 // pred_region
        _
      $region20: #{residual_block_forward.3} parent=11 // pred_fallthru
        _
    $region12: #{residual_block_forward.3} parent=5 // pred_fallthru
      _
    %p206 = scmp.lt.s32.totalorder %s13, 2
    // Predicated region
    $region21: #{residual_block_forward.3} parent=5 // pred_check
      %p207 = pneg %p206
    $region22: #{residual_block_forward.3} parent=5 // pred_check_branch
      %209 = sbr.rel (%p207) target = $region24
    $region23: #{residual_block_forward.3} parent=5 // pred_region
      // Predicated region
      $region25: #{residual_block_forward.3} parent=23 // pred_check
        %p210 = pneg %p33
      $region26: #{residual_block_forward.3} parent=23 // pred_check_branch
        %212 = sbr.rel (%p210) target = $region28
      $region27: #{residual_block_forward.3} parent=23 // pred_region
        %p213 = scmp.lt.s32.totalorder %s13, 1
        %s214 = scalar_select %p213, %s13, 1
        %s215 = smul.addr %s214, 3
        %s216 = smul.addr %s215, 8
        %s217 = scalar_lea.vmem %s0, %s216
      $region28: #{residual_block_forward.3} parent=23 // pred_fallthru
        _
    $region24: #{residual_block_forward.3} parent=5 // pred_fallthru
      _
    %p218 = scmp.le.s32.totalorder 1, %s13
    %p219 = scmp.lt.s32.totalorder %s13, 3
    %p220 = pnand %p218, %p219
    %p221 = pneg %p220
    // Predicated region
    $region29: #{residual_block_forward.3} parent=5 // pred_check
      _
    $region30: #{residual_block_forward.3} parent=5 // pred_check_branch
      %223 = sbr.rel (%p220) target = $region32
    $region31: #{residual_block_forward.3} parent=5 // pred_region
      %s224 = ssub.s32 %s13, 1
      %p225 = scmp.lt.s32.totalorder %s18, 1
      %s226 = scalar_select %p225, %s18, 1
      %s227 = smul.addr %s226, 3
      %s228 = smul.addr %s227, 8
      %s229 = scalar_lea.vmem %s0, %s228
      %p230 = pneg %p39
      %p231 = pneg %p36
      %p232 = pneg %p60
      %p233 = pneg %p57
      %p234 = pneg %p81
      %p235 = pneg %p78
      %p236 = pneg %p107
      %p237 = pneg %p104
      %p238 = scmp.lt.s32.totalorder %s18, 1
      %s239 = scalar_select %p238, %s18, 1
      %s240 = smul.addr %s239, 8
      %s241 = scalar_lea.vmem %s3, %s240
      %p242 = pneg %p133
      %p243 = pneg %p130
      %p244 = scmp.lt.s32.totalorder %s18, 1
      %s245 = scalar_select %p244, %s18, 1
      %s246 = smul.addr %s245, 2
      %s247 = scalar_lea.vmem %s4, %s246
      %p248 = pneg %p159
      %p249 = pneg %p156
      %p250 = scmp.lt.s32.totalorder %s18, 1
      %s251 = scalar_select %p250, %s18, 1
      %s252 = smul.addr %s251, 8
      %s253 = scalar_lea.vmem %s5, %s252
      %p254 = pneg %p185
      %p255 = pneg %p182
      %p256 = scmp.lt.s32.totalorder %s18, 1
      %s257 = scalar_select %p256, %s18, 1
      %s258 = smul.addr %s257, 2
      %s259 = scalar_lea.vmem %s6, %s258
      %p260 = scmp.lt.s32.totalorder %s18, 1
      %s261 = scalar_select %p260, %s18, 1
      %s262 = smul.addr %s261, 3
      %s263 = smul.addr %s262, 8
      %s264 = scalar_lea.vmem %s0, %s263
      %p265 = scmp.lt.s32.totalorder %s18, 1
      %s266 = scalar_select %p265, %s18, 1
      %s267 = smul.addr %s266, 8
      %s268 = scalar_lea.vmem %s3, %s267
      %p269 = scmp.lt.s32.totalorder %s18, 1
      %s270 = scalar_select %p269, %s18, 1
      %s271 = smul.addr %s270, 2
      %s272 = scalar_lea.vmem %s4, %s271
      %p273 = scmp.lt.s32.totalorder %s18, 1
      %s274 = scalar_select %p273, %s18, 1
      %s275 = smul.addr %s274, 8
      %s276 = scalar_lea.vmem %s5, %s275
      %p277 = scmp.lt.s32.totalorder %s18, 1
      %s278 = scalar_select %p277, %s18, 1
      %s279 = smul.addr %s278, 2
      %s280 = scalar_lea.vmem %s6, %s279
      %v281 = vld [vmem:[%s264] ss:$2 sm:$0xff]
      %vm282 = vcmask 31744
      %283 = vst.msk [vmem:[#allocation2] sm:$0xff] %vm282, %v281
      %s284 = scalar_lea.vmem %s264, 1
      %v285 = vld [vmem:[%s284] ss:$2 sm:$0xff]
      %287 = vrot.lane.b32.xlu0 %v285, 4
      %v288 = vpop.permute.xlu0 %287
      %vm290 = vcmask 64544
      %291 = vst.msk [vmem:[#allocation2] sm:$0xff] %vm290, %v288
      %s292 = scalar_lea.vmem %s264, 2
      %v293 = vld [vmem:[%s292] ss:$2 sm:$0xff]
      %295 = vrot.lane.b32.xlu0 %v293, 8
      %v296 = vpop.permute.xlu0 %295
      %vm298 = vcmask 97344
      %299 = vst.msk [vmem:[#allocation2] sm:$0xff] %vm298, %v296
      %v300 = vld [vmem:[#allocation2] sm:$0xff]
      %v301 = vld [vmem:[%s1] sm:$0xff]
      %v302 = vld [vmem:[%s1 + $0x8] sm:$0xf]
      %vm303 = vcmask 97280
      %v305 = vsel %vm303, %v300, 0
      %vm307 = vcmask 1043456
      %v309 = vsel %vm307, %v302, 0
      %311 = vmatprep.subr.mxu0 0.0
      %312 = vmatpush1.msra.mxu0 0.0
      %313 = vmatprep.subr.mxu0 0.0
      %314 = vmatpush1.msra.mxu0 0.0
      %315 = vmatprep.subr.mxu0 0.0
      %316 = vmatpush1.msra.mxu0 0.0
      %317 = vmatprep.subr.mxu0 0.0
      %318 = vmatpush1.msra.mxu0 0.0
      %319 = vmatprep.subr.mxu0 0.0
      %320 = vmatpush1.msra.mxu0 0.0
      %321 = vmatprep.subr.mxu0 0.0
      %322 = vmatpush1.msra.mxu0 0.0
      %323 = vmatprep.subr.mxu0 0.0
      %324 = vmatpush1.msra.mxu0 0.0
      %325 = vmatprep.subr.mxu0 0.0
      %326 = vmatpush1.msra.mxu0 0.0
      %327 = vmatprep.subr.mxu0 0.0
      %328 = vmatpush1.msra.mxu0 0.0
      %329 = vmatprep.subr.mxu0 0.0
      %330 = vmatpush1.msra.mxu0 0.0
      %331 = vmatprep.subr.mxu0 0.0
      %332 = vmatpush1.msra.mxu0 0.0
      %333 = vmatprep.subr.mxu0 0.0
      %334 = vmatpush1.msra.mxu0 0.0
      %335 = vmatprep.subr.mxu0 0.0
      %336 = vmatpush1.msra.mxu0 0.0
      %337 = vmatprep.subr.mxu0 0.0
      %338 = vmatpush1.msra.mxu0 0.0
      %339 = vmatprep.subr.mxu0 0.0
      %340 = vmatpush1.msra.mxu0 %v309
      %341 = vmatprep.subr.mxu0 0.0
      %342 = vmatpush1.msra.mxu0 %v301
      %343 = vmatprep.subr.mxu0 0.0
      %344 = vmatpush2.msra.mxu0 0.0
      %345 = vmatprep.subr.mxu0 0.0
      %346 = vmatpush2.msra.mxu0 0.0
      %347 = vmatprep.subr.mxu0 0.0
      %348 = vmatpush2.msra.mxu0 0.0
      %349 = vmatprep.subr.mxu0 0.0
      %350 = vmatpush2.msra.mxu0 0.0
      %351 = vmatprep.subr.mxu0 0.0
      %352 = vmatpush2.msra.mxu0 0.0
      %353 = vmatprep.subr.mxu0 0.0
      %354 = vmatpush2.msra.mxu0 0.0
      %355 = vmatprep.subr.mxu0 0.0
      %356 = vmatpush2.msra.mxu0 0.0
      %357 = vmatprep.subr.mxu0 0.0
      %358 = vmatpush2.msra.mxu0 0.0
      %359 = vmatprep.subr.mxu0 0.0
      %360 = vmatpush2.msra.mxu0 0.0
      %361 = vmatprep.subr.mxu0 0.0
      %362 = vmatpush2.msra.mxu0 0.0
      %363 = vmatprep.subr.mxu0 0.0
      %364 = vmatpush2.msra.mxu0 0.0
      %365 = vmatprep.subr.mxu0 0.0
      %366 = vmatpush2.msra.mxu0 0.0
      %367 = vmatprep.subr.mxu0 0.0
      %368 = vmatpush2.msra.mxu0 0.0
      %369 = vmatprep.subr.mxu0 0.0
      %370 = vmatpush2.msra.mxu0 0.0
      %371 = vmatprep.subr.mxu0 0.0
      %372 = vmatpush2.msra.mxu0 0.0
      %373 = vmatprep.subr.mxu0 0.0
      %374 = vmatpush2.msra.mxu0 0.0
      %375 = vmatprep.mubr.f32.mxu0 0.0
      %376 = vmatmul.mubr.f32.gmra.mxu0 %v305
      %v377 = vpop.f32.mrf.mxu0
      %v378 = vadd.f32 0.0, %v377
      %v379 = vpop.f32.mrf.mxu0
      %380 = vdwg.mxu0
      %vm381 = vcmask 64512
      %382 = vst.msk [vmem:[%s268] sm:$0xff] %vm381, %v378
      %v383 = vsel %vm381, %v378, 0.0
      %v384 = vrot.slane %v383, 4
      %v385 = vadd.f32 %v383, %v384
      %v386 = vrot.slane %v385, 2
      %v387 = vadd.f32 %v385, %v386
      %v388 = vrot.slane %v387, 1
      %v389 = vadd.f32 %v387, %v388
      %v390 = vrcp.pop 8.0
      %v391 = vmul.f32 %v389, %v390
      %v392 = vsub.f32 %v378, %v391
      %vm393 = vcmask 57344
      %394 = vst.msk [vmem:[%s272] sm:$0x1] %vm393, %v391
      %v395 = vmul.f32 %v392, %v392
      %v396 = vsel %vm381, %v395, 0.0
      %v397 = vrot.slane %v396, 4
      %v398 = vadd.f32 %v396, %v397
      %v399 = vrot.slane %v398, 2
      %v400 = vadd.f32 %v398, %v399
      %v401 = vrot.slane %v400, 1
      %v402 = vadd.f32 %v400, %v401
      %403 = vst.msk [vmem:[%s272 + $0x1] sm:$0x1] %vm393, %v402
      %v404 = vld [vmem:[#allocation2] sm:$0xff]
      %v405 = vld [vmem:[%s2] sm:$0xf]
      %407 = vrot.lane.b32.xlu0 %v404, 124
      %v408 = vpop.permute.xlu0 %407
      %v409 = vsel %vm282, %v408, 0
      %v412 = vsel %vm307, %v405, 0
      %414 = vmatprep.subr.mxu0 0.0
      %415 = vmatpush1.msra.mxu0 0.0
      %416 = vmatprep.subr.mxu0 0.0
      %417 = vmatpush1.msra.mxu0 0.0
      %418 = vmatprep.subr.mxu0 0.0
      %419 = vmatpush1.msra.mxu0 0.0
      %420 = vmatprep.subr.mxu0 0.0
      %421 = vmatpush1.msra.mxu0 0.0
      %422 = vmatprep.subr.mxu0 0.0
      %423 = vmatpush1.msra.mxu0 0.0
      %424 = vmatprep.subr.mxu0 0.0
      %425 = vmatpush1.msra.mxu0 0.0
      %426 = vmatprep.subr.mxu0 0.0
      %427 = vmatpush1.msra.mxu0 0.0
      %428 = vmatprep.subr.mxu0 0.0
      %429 = vmatpush1.msra.mxu0 0.0
      %430 = vmatprep.subr.mxu0 0.0
      %431 = vmatpush1.msra.mxu0 0.0
      %432 = vmatprep.subr.mxu0 0.0
      %433 = vmatpush1.msra.mxu0 0.0
      %434 = vmatprep.subr.mxu0 0.0
      %435 = vmatpush1.msra.mxu0 0.0
      %436 = vmatprep.subr.mxu0 0.0
      %437 = vmatpush1.msra.mxu0 0.0
      %438 = vmatprep.subr.mxu0 0.0
      %439 = vmatpush1.msra.mxu0 0.0
      %440 = vmatprep.subr.mxu0 0.0
      %441 = vmatpush1.msra.mxu0 0.0
      %442 = vmatprep.subr.mxu0 0.0
      %443 = vmatpush1.msra.mxu0 0.0
      %444 = vmatprep.subr.mxu0 0.0
      %445 = vmatpush1.msra.mxu0 %v412
      %446 = vmatprep.subr.mxu0 0.0
      %447 = vmatpush2.msra.mxu0 0.0
      %448 = vmatprep.subr.mxu0 0.0
      %449 = vmatpush2.msra.mxu0 0.0
      %450 = vmatprep.subr.mxu0 0.0
      %451 = vmatpush2.msra.mxu0 0.0
      %452 = vmatprep.subr.mxu0 0.0
      %453 = vmatpush2.msra.mxu0 0.0
      %454 = vmatprep.subr.mxu0 0.0
      %455 = vmatpush2.msra.mxu0 0.0
      %456 = vmatprep.subr.mxu0 0.0
      %457 = vmatpush2.msra.mxu0 0.0
      %458 = vmatprep.subr.mxu0 0.0
      %459 = vmatpush2.msra.mxu0 0.0
      %460 = vmatprep.subr.mxu0 0.0
      %461 = vmatpush2.msra.mxu0 0.0
      %462 = vmatprep.subr.mxu0 0.0
      %463 = vmatpush2.msra.mxu0 0.0
      %464 = vmatprep.subr.mxu0 0.0
      %465 = vmatpush2.msra.mxu0 0.0
      %466 = vmatprep.subr.mxu0 0.0
      %467 = vmatpush2.msra.mxu0 0.0
      %468 = vmatprep.subr.mxu0 0.0
      %469 = vmatpush2.msra.mxu0 0.0
      %470 = vmatprep.subr.mxu0 0.0
      %471 = vmatpush2.msra.mxu0 0.0
      %472 = vmatprep.subr.mxu0 0.0
      %473 = vmatpush2.msra.mxu0 0.0
      %474 = vmatprep.subr.mxu0 0.0
      %475 = vmatpush2.msra.mxu0 0.0
      %476 = vmatprep.subr.mxu0 0.0
      %477 = vmatpush2.msra.mxu0 0.0
      %478 = vmatprep.mubr.f32.mxu0 0.0
      %479 = vmatmul.mubr.f32.gmra.mxu0 %v409
      %v480 = vpop.f32.mrf.mxu0
      %v481 = vadd.f32 0.0, %v480
      %v482 = vpop.f32.mrf.mxu0
      %483 = vdwg.mxu0
      %484 = vst.msk [vmem:[%s276] sm:$0xff] %vm381, %v481
      %v485 = vsel %vm381, %v481, 0.0
      %v486 = vrot.slane %v485, 4
      %v487 = vadd.f32 %v485, %v486
      %v488 = vrot.slane %v487, 2
      %v489 = vadd.f32 %v487, %v488
      %v490 = vrot.slane %v489, 1
      %v491 = vadd.f32 %v489, %v490
      %v492 = vmul.f32 %v491, %v390
      %v493 = vsub.f32 %v481, %v492
      %494 = vst.msk [vmem:[%s280] sm:$0x1] %vm393, %v492
      %v495 = vmul.f32 %v493, %v493
      %v496 = vsel %vm381, %v495, 0.0
      %v497 = vrot.slane %v496, 4
      %v498 = vadd.f32 %v496, %v497
      %v499 = vrot.slane %v498, 2
      %v500 = vadd.f32 %v498, %v499
      %v501 = vrot.slane %v500, 1
      %v502 = vadd.f32 %v500, %v501
      %503 = vst.msk [vmem:[%s280 + $0x1] sm:$0x1] %vm393, %v502
      %p504 = scmp.lt.s32.totalorder %s18, 1
      %s505 = scalar_select %p504, %s18, 1
      %s506 = smul.addr %s505, 8
      %s507 = scalar_lea.vmem %s3, %s506
      %p508 = scmp.lt.s32.totalorder %s18, 1
      %s509 = scalar_select %p508, %s18, 1
      %s510 = smul.addr %s509, 2
      %s511 = scalar_lea.vmem %s4, %s510
      %p512 = scmp.lt.s32.totalorder %s18, 1
      %s513 = scalar_select %p512, %s18, 1
      %s514 = smul.addr %s513, 8
      %s515 = scalar_lea.vmem %s5, %s514
      %p516 = scmp.lt.s32.totalorder %s18, 1
      %s517 = scalar_select %p516, %s18, 1
      %s518 = smul.addr %s517, 2
      %s519 = scalar_lea.vmem %s6, %s518
      // Predicated region
      $region33: #{residual_block_forward.3} parent=31 // pred_check
        %p520 = pneg %p104
      $region34: #{residual_block_forward.3} parent=31 // pred_check_branch
        %522 = sbr.rel (%p520) target = $region36
      $region35: #{residual_block_forward.3} parent=31 // pred_region
        _
      $region36: #{residual_block_forward.3} parent=31 // pred_fallthru
        _
      // Predicated region
      $region37: #{residual_block_forward.3} parent=31 // pred_check
        %p523 = pneg %p130
      $region38: #{residual_block_forward.3} parent=31 // pred_check_branch
        %525 = sbr.rel (%p523) target = $region40
      $region39: #{residual_block_forward.3} parent=31 // pred_region
        _
      $region40: #{residual_block_forward.3} parent=31 // pred_fallthru
        _
      // Predicated region
      $region41: #{residual_block_forward.3} parent=31 // pred_check
        %p526 = pneg %p156
      $region42: #{residual_block_forward.3} parent=31 // pred_check_branch
        %528 = sbr.rel (%p526) target = $region44
      $region43: #{residual_block_forward.3} parent=31 // pred_region
        _
      $region44: #{residual_block_forward.3} parent=31 // pred_fallthru
        _
      // Predicated region
      $region45: #{residual_block_forward.3} parent=31 // pred_check
        %p529 = pneg %p182
      $region46: #{residual_block_forward.3} parent=31 // pred_check_branch
        %531 = sbr.rel (%p529) target = $region48
      $region47: #{residual_block_forward.3} parent=31 // pred_region
        _
      $region48: #{residual_block_forward.3} parent=31 // pred_fallthru
        _
    $region32: #{residual_block_forward.3} parent=5 // pred_fallthru
      _
    %p532 = scmp.le.s32.totalorder 2, %s13
    // Predicated region
    $region49: #{residual_block_forward.3} parent=5 // pred_check
      %p533 = pneg %p532
    $region50: #{residual_block_forward.3} parent=5 // pred_check_branch
      %535 = sbr.rel (%p533) target = $region52
    $region51: #{residual_block_forward.3} parent=5 // pred_region
      %s536 = ssub.s32 %s13, 2
      // Predicated region
      $region53: #{residual_block_forward.3} parent=51 // pred_check
        %p537 = pneg %p110
      $region54: #{residual_block_forward.3} parent=51 // pred_check_branch
        %539 = sbr.rel (%p537) target = $region56
      $region55: #{residual_block_forward.3} parent=51 // pred_region
        %p540 = scmp.lt.s32.totalorder %s19, 1
        %s541 = scalar_select %p540, %s19, 1
        %s542 = smul.addr %s541, 8
        %s543 = scalar_lea.vmem %s3, %s542
      $region56: #{residual_block_forward.3} parent=51 // pred_fallthru
        _
      // Predicated region
      $region57: #{residual_block_forward.3} parent=51 // pred_check
        %p544 = pneg %p136
      $region58: #{residual_block_forward.3} parent=51 // pred_check_branch
        %546 = sbr.rel (%p544) target = $region60
      $region59: #{residual_block_forward.3} parent=51 // pred_region
        %p547 = scmp.lt.s32.totalorder %s19, 1
        %s548 = scalar_select %p547, %s19, 1
        %s549 = smul.addr %s548, 2
        %s550 = scalar_lea.vmem %s4, %s549
      $region60: #{residual_block_forward.3} parent=51 // pred_fallthru
        _
      // Predicated region
      $region61: #{residual_block_forward.3} parent=51 // pred_check
        %p551 = pneg %p162
      $region62: #{residual_block_forward.3} parent=51 // pred_check_branch
        %553 = sbr.rel (%p551) target = $region64
      $region63: #{residual_block_forward.3} parent=51 // pred_region
        %p554 = scmp.lt.s32.totalorder %s19, 1
        %s555 = scalar_select %p554, %s19, 1
        %s556 = smul.addr %s555, 8
        %s557 = scalar_lea.vmem %s5, %s556
      $region64: #{residual_block_forward.3} parent=51 // pred_fallthru
        _
      // Predicated region
      $region65: #{residual_block_forward.3} parent=51 // pred_check
        %p558 = pneg %p188
      $region66: #{residual_block_forward.3} parent=51 // pred_check_branch
        %560 = sbr.rel (%p558) target = $region68
      $region67: #{residual_block_forward.3} parent=51 // pred_region
        %p561 = scmp.lt.s32.totalorder %s19, 1
        %s562 = scalar_select %p561, %s19, 1
        %s563 = smul.addr %s562, 2
        %s564 = scalar_lea.vmem %s6, %s563
      $region68: #{residual_block_forward.3} parent=51 // pred_fallthru
        _
    $region52: #{residual_block_forward.3} parent=5 // pred_fallthru
      _
  $region6: #{residual_block_forward.3} parent=0 // loop_footer
    %s17 = sadd.s32 1, %s13
  $region7: #{residual_block_forward.3} parent=0 // loop_footer_branch
    %12 = sbr.rel target = $region3
  $region8: #{residual_block_forward.3} parent=0 // loop_exit
    _

// kernel: residual_block_forward.5
$region0: #{residual_block_forward.5}
  #allocation0 [shape = 'u32[]', space=smem, size = 0x4, offset = 0x4, fixed_abs, tag = 'smem constant byte address 0x4 - core index']
  #allocation1 [shape = 'u32[144,128]{1,0:T(1,128)}', space=vmem, size = 0x12000, scoped, tag = 'internal scratch']
  %s0 = inlined_call_operand.vmem [shape: f32[2,8,8], index: 0, kind: input, shape index: {}]
  %s1 = inlined_call_operand.vmem [shape: f32[2,8,8], index: 1, kind: input, shape index: {}]
  %s2 = inlined_call_operand.vmem [shape: f32[1,8], index: 2, kind: input, shape index: {}]
  %s3 = inlined_call_operand.vmem [shape: f32[1,8], index: 3, kind: input, shape index: {}]
  %s4 = inlined_call_operand.vmem [shape: f32[1,8], index: 4, kind: input, shape index: {}]
  %s5 = inlined_call_operand.vmem [shape: f32[1,8], index: 5, kind: input, shape index: {}]
  %s6 = inlined_call_operand.vmem [shape: f32[2,8,8], index: 6, kind: output, shape index: {}]
  %s7 = sld [smem:[#allocation0]]
  $region57: #{residual_block_forward.5} parent=0
    _
  %s9 = ssub.s32 1, %s7
  %s10 = scalar_select 0, %s9, %s7
  loop: start=0, step=1, limit=4
  $region2: #{residual_block_forward.5} parent=0 // loop_pre_header
    _
  $region3: #{residual_block_forward.5} parent=0 // loop_header
    %s12 = sphi 0, %s16
    %p13 = scmp.ge.s32.totalorder %s12, 4
    %s22 = sphi 0, %s24
    %s25 = sphi 0, %s22
    %s26 = sphi 0, %s25
    %s42 = sphi 0, %s26
    %s48 = sphi 0, %s50
    %s51 = sphi 0, %s48
    %s52 = sphi 0, %s51
    %s68 = sphi 0, %s52
    %s72 = sphi 0, %s72
    %s74 = sphi 0, %s72
    %s75 = sphi 0, %s74
    %s89 = sphi 0, %s75
    %s93 = sphi 0, %s93
    %s95 = sphi 0, %s93
    %s96 = sphi 0, %s95
    %s110 = sphi 0, %s96
    %s114 = sphi 0, %s114
    %s116 = sphi 0, %s114
    %s117 = sphi 0, %s116
    %s131 = sphi 0, %s117
    %s135 = sphi 0, %s135
    %s137 = sphi 0, %s135
    %s138 = sphi 0, %s137
    %s152 = sphi 0, %s138
    %s158 = sphi 0, %s160
    %s161 = sphi 0, %s158
    %s162 = sphi 0, %s161
    %s178 = sphi 0, %s162
  $region4: #{residual_block_forward.5} parent=0 // loop_header_branch
    %15 = sbr.rel (%p13) target = $region8
  $region5: #{residual_block_forward.5} parent=0 // loop_body
    %s17 = ssub.s32 %s12, 1
    %s18 = ssub.s32 %s12, 2
    %s19 = sadd.s32 %s12, 1
    %s20 = ssub.s32 %s12, %s19
    %p21 = scmp.eq.s32.totalorder %s20, 0
    %s23 = sadd.s32 %s22, 1
    %s24 = scalar_select %p21, %s22, %s23
    %p27 = pneg %p21
    %p28 = scmp.eq.s32.totalorder %s12, 1
    %p29 = por %p27, %p28
    %p30 = scmp.ne.s32.totalorder %s22, %s25
    %p31 = scmp.eq.s32.totalorder %s12, 0
    %p32 = por %p30, %p31
    %p33 = scmp.ne.s32.totalorder %s22, %s25
    %p34 = scmp.eq.s32.totalorder %s17, 1
    %p35 = por %p33, %p34
    %p36 = scmp.ne.s32.totalorder %s25, %s26
    %p37 = scmp.eq.s32.totalorder %s17, 0
    %p38 = por %p36, %p37
    %p39 = scmp.ne.s32.totalorder %s25, %s26
    %p40 = scmp.eq.s32.totalorder %s18, 1
    %p41 = por %p39, %p40
    %p43 = scmp.ne.s32.totalorder %s26, %s42
    %p44 = scmp.eq.s32.totalorder %s18, 0
    %p45 = por %p43, %p44
    %s46 = ssub.s32 %s12, %s19
    %p47 = scmp.eq.s32.totalorder %s46, 0
    %s49 = sadd.s32 %s48, 1
    %s50 = scalar_select %p47, %s48, %s49
    %p53 = pneg %p47
    %p54 = scmp.eq.s32.totalorder %s12, 1
    %p55 = por %p53, %p54
    %p56 = scmp.ne.s32.totalorder %s48, %s51
    %p57 = scmp.eq.s32.totalorder %s12, 0
    %p58 = por %p56, %p57
    %p59 = scmp.ne.s32.totalorder %s48, %s51
    %p60 = scmp.eq.s32.totalorder %s17, 1
    %p61 = por %p59, %p60
    %p62 = scmp.ne.s32.totalorder %s51, %s52
    %p63 = scmp.eq.s32.totalorder %s17, 0
    %p64 = por %p62, %p63
    %p65 = scmp.ne.s32.totalorder %s51, %s52
    %p66 = scmp.eq.s32.totalorder %s18, 1
    %p67 = por %p65, %p66
    %p69 = scmp.ne.s32.totalorder %s52, %s68
    %p70 = scmp.eq.s32.totalorder %s18, 0
    %p71 = por %p69, %p70
    %s73 = sadd.s32 %s72, 1
    %p76 = scmp.eq.s32.totalorder %s12, 1
    %p77 = scmp.ne.s32.totalorder %s72, %s74
    %p78 = scmp.eq.s32.totalorder %s12, 0
    %p79 = por %p77, %p78
    %p80 = scmp.ne.s32.totalorder %s72, %s74
    %p81 = scmp.eq.s32.totalorder %s17, 1
    %p82 = por %p80, %p81
    %p83 = scmp.ne.s32.totalorder %s74, %s75
    %p84 = scmp.eq.s32.totalorder %s17, 0
    %p85 = por %p83, %p84
    %p86 = scmp.ne.s32.totalorder %s74, %s75
    %p87 = scmp.eq.s32.totalorder %s18, 1
    %p88 = por %p86, %p87
    %p90 = scmp.ne.s32.totalorder %s75, %s89
    %p91 = scmp.eq.s32.totalorder %s18, 0
    %p92 = por %p90, %p91
    %s94 = sadd.s32 %s93, 1
    %p97 = scmp.eq.s32.totalorder %s12, 1
    %p98 = scmp.ne.s32.totalorder %s93, %s95
    %p99 = scmp.eq.s32.totalorder %s12, 0
    %p100 = por %p98, %p99
    %p101 = scmp.ne.s32.totalorder %s93, %s95
    %p102 = scmp.eq.s32.totalorder %s17, 1
    %p103 = por %p101, %p102
    %p104 = scmp.ne.s32.totalorder %s95, %s96
    %p105 = scmp.eq.s32.totalorder %s17, 0
    %p106 = por %p104, %p105
    %p107 = scmp.ne.s32.totalorder %s95, %s96
    %p108 = scmp.eq.s32.totalorder %s18, 1
    %p109 = por %p107, %p108
    %p111 = scmp.ne.s32.totalorder %s96, %s110
    %p112 = scmp.eq.s32.totalorder %s18, 0
    %p113 = por %p111, %p112
    %s115 = sadd.s32 %s114, 1
    %p118 = scmp.eq.s32.totalorder %s12, 1
    %p119 = scmp.ne.s32.totalorder %s114, %s116
    %p120 = scmp.eq.s32.totalorder %s12, 0
    %p121 = por %p119, %p120
    %p122 = scmp.ne.s32.totalorder %s114, %s116
    %p123 = scmp.eq.s32.totalorder %s17, 1
    %p124 = por %p122, %p123
    %p125 = scmp.ne.s32.totalorder %s116, %s117
    %p126 = scmp.eq.s32.totalorder %s17, 0
    %p127 = por %p125, %p126
    %p128 = scmp.ne.s32.totalorder %s116, %s117
    %p129 = scmp.eq.s32.totalorder %s18, 1
    %p130 = por %p128, %p129
    %p132 = scmp.ne.s32.totalorder %s117, %s131
    %p133 = scmp.eq.s32.totalorder %s18, 0
    %p134 = por %p132, %p133
    %s136 = sadd.s32 %s135, 1
    %p139 = scmp.eq.s32.totalorder %s12, 1
    %p140 = scmp.ne.s32.totalorder %s135, %s137
    %p141 = scmp.eq.s32.totalorder %s12, 0
    %p142 = por %p140, %p141
    %p143 = scmp.ne.s32.totalorder %s135, %s137
    %p144 = scmp.eq.s32.totalorder %s17, 1
    %p145 = por %p143, %p144
    %p146 = scmp.ne.s32.totalorder %s137, %s138
    %p147 = scmp.eq.s32.totalorder %s17, 0
    %p148 = por %p146, %p147
    %p149 = scmp.ne.s32.totalorder %s137, %s138
    %p150 = scmp.eq.s32.totalorder %s18, 1
    %p151 = por %p149, %p150
    %p153 = scmp.ne.s32.totalorder %s138, %s152
    %p154 = scmp.eq.s32.totalorder %s18, 0
    %p155 = por %p153, %p154
    %s156 = ssub.s32 %s12, %s19
    %p157 = scmp.eq.s32.totalorder %s156, 0
    %s159 = sadd.s32 %s158, 1
    %s160 = scalar_select %p157, %s158, %s159
    %p163 = pneg %p157
    %p164 = scmp.eq.s32.totalorder %s12, 1
    %p165 = por %p163, %p164
    %p166 = scmp.ne.s32.totalorder %s158, %s161
    %p167 = scmp.eq.s32.totalorder %s12, 0
    %p168 = por %p166, %p167
    %p169 = scmp.ne.s32.totalorder %s158, %s161
    %p170 = scmp.eq.s32.totalorder %s17, 1
    %p171 = por %p169, %p170
    %p172 = scmp.ne.s32.totalorder %s161, %s162
    %p173 = scmp.eq.s32.totalorder %s17, 0
    %p174 = por %p172, %p173
    %p175 = scmp.ne.s32.totalorder %s161, %s162
    %p176 = scmp.eq.s32.totalorder %s18, 1
    %p177 = por %p175, %p176
    %p179 = scmp.ne.s32.totalorder %s162, %s178
    %p180 = scmp.eq.s32.totalorder %s18, 0
    %p181 = por %p179, %p180
    %p182 = scmp.le.s32.totalorder 1, %s12
    %p183 = scmp.lt.s32.totalorder %s12, 3
    %p184 = pnand %p182, %p183
    %p185 = pneg %p184
    // Predicated region
    $region9: #{residual_block_forward.5} parent=5 // pred_check
      _
    $region10: #{residual_block_forward.5} parent=5 // pred_check_branch
      %187 = sbr.rel (%p184) target = $region12
    $region11: #{residual_block_forward.5} parent=5 // pred_region
      %s188 = ssub.s32 %s12, 1
      // Predicated region
      $region13: #{residual_block_forward.5} parent=11 // pred_check
        %p189 = pneg %p85
      $region14: #{residual_block_forward.5} parent=11 // pred_check_branch
        %191 = sbr.rel (%p189) target = $region16
      $region15: #{residual_block_forward.5} parent=11 // pred_region
        _
      $region16: #{residual_block_forward.5} parent=11 // pred_fallthru
        _
      // Predicated region
      $region17: #{residual_block_forward.5} parent=11 // pred_check
        %p192 = pneg %p106
      $region18: #{residual_block_forward.5} parent=11 // pred_check_branch
        %194 = sbr.rel (%p192) target = $region20
      $region19: #{residual_block_forward.5} parent=11 // pred_region
        _
      $region20: #{residual_block_forward.5} parent=11 // pred_fallthru
        _
      // Predicated region
      $region21: #{residual_block_forward.5} parent=11 // pred_check
        %p195 = pneg %p127
      $region22: #{residual_block_forward.5} parent=11 // pred_check_branch
        %197 = sbr.rel (%p195) target = $region24
      $region23: #{residual_block_forward.5} parent=11 // pred_region
        _
      $region24: #{residual_block_forward.5} parent=11 // pred_fallthru
        _
      // Predicated region
      $region25: #{residual_block_forward.5} parent=11 // pred_check
        %p198 = pneg %p148
      $region26: #{residual_block_forward.5} parent=11 // pred_check_branch
        %200 = sbr.rel (%p198) target = $region28
      $region27: #{residual_block_forward.5} parent=11 // pred_region
        _
      $region28: #{residual_block_forward.5} parent=11 // pred_fallthru
        _
    $region12: #{residual_block_forward.5} parent=5 // pred_fallthru
      _
    %p201 = scmp.lt.s32.totalorder %s12, 2
    // Predicated region
    $region29: #{residual_block_forward.5} parent=5 // pred_check
      %p202 = pneg %p201
    $region30: #{residual_block_forward.5} parent=5 // pred_check_branch
      %204 = sbr.rel (%p202) target = $region32
    $region31: #{residual_block_forward.5} parent=5 // pred_region
      // Predicated region
      $region33: #{residual_block_forward.5} parent=31 // pred_check
        %p205 = pneg %p32
      $region34: #{residual_block_forward.5} parent=31 // pred_check_branch
        %207 = sbr.rel (%p205) target = $region36
      $region35: #{residual_block_forward.5} parent=31 // pred_region
        %p208 = scmp.lt.s32.totalorder %s12, 1
        %s209 = scalar_select %p208, %s12, 1
        %s210 = smul.addr %s209, 8
        %s211 = scalar_lea.vmem %s0, %s210
      $region36: #{residual_block_forward.5} parent=31 // pred_fallthru
        _
      // Predicated region
      $region37: #{residual_block_forward.5} parent=31 // pred_check
        %p212 = pneg %p58
      $region38: #{residual_block_forward.5} parent=31 // pred_check_branch
        %214 = sbr.rel (%p212) target = $region40
      $region39: #{residual_block_forward.5} parent=31 // pred_region
        %p215 = scmp.lt.s32.totalorder %s12, 1
        %s216 = scalar_select %p215, %s12, 1
        %s217 = smul.addr %s216, 8
        %s218 = scalar_lea.vmem %s1, %s217
      $region40: #{residual_block_forward.5} parent=31 // pred_fallthru
        _
    $region32: #{residual_block_forward.5} parent=5 // pred_fallthru
      _
    %p219 = scmp.le.s32.totalorder 1, %s12
    %p220 = scmp.lt.s32.totalorder %s12, 3
    %p221 = pnand %p219, %p220
    %p222 = pneg %p221
    // Predicated region
    $region41: #{residual_block_forward.5} parent=5 // pred_check
      _
    $region42: #{residual_block_forward.5} parent=5 // pred_check_branch
      %224 = sbr.rel (%p221) target = $region44
    $region43: #{residual_block_forward.5} parent=5 // pred_region
      %s225 = ssub.s32 %s12, 1
      %p226 = scmp.lt.s32.totalorder %s17, 1
      %s227 = scalar_select %p226, %s17, 1
      %s228 = smul.addr %s227, 8
      %s229 = scalar_lea.vmem %s0, %s228
      %p230 = pneg %p38
      %p231 = pneg %p35
      %p232 = scmp.lt.s32.totalorder %s17, 1
      %s233 = scalar_select %p232, %s17, 1
      %s234 = smul.addr %s233, 8
      %s235 = scalar_lea.vmem %s1, %s234
      %p236 = pneg %p64
      %p237 = pneg %p61
      %p238 = pneg %p85
      %p239 = pneg %p82
      %p240 = pneg %p106
      %p241 = pneg %p103
      %p242 = pneg %p127
      %p243 = pneg %p124
      %p244 = pneg %p148
      %p245 = pneg %p145
      %p246 = pneg %p174
      %p247 = pneg %p171
      %p248 = scmp.lt.s32.totalorder %s17, 1
      %s249 = scalar_select %p248, %s17, 1
      %s250 = smul.addr %s249, 8
      %s251 = scalar_lea.vmem %s6, %s250
      %p252 = scmp.lt.s32.totalorder %s17, 1
      %s253 = scalar_select %p252, %s17, 1
      %s254 = smul.addr %s253, 8
      %s255 = scalar_lea.vmem %s0, %s254
      %p256 = scmp.lt.s32.totalorder %s17, 1
      %s257 = scalar_select %p256, %s17, 1
      %s258 = smul.addr %s257, 8
      %s259 = scalar_lea.vmem %s1, %s258
      %p260 = scmp.lt.s32.totalorder %s17, 1
      %s261 = scalar_select %p260, %s17, 1
      %s262 = smul.addr %s261, 8
      %s263 = scalar_lea.vmem %s6, %s262
      %v264 = vld [vmem:[%s255] sm:$0xff]
      %v265 = vld [vmem:[%s2] sm:$0x1]
      %v267 = vlaneseq
      %v268 = vshrl.u32 %v267, 7
      %v269 = vsub.s32 0, %v268
      %v270 = vrot.slane %v265, %v269
      %v272 = vmul.f32 %v264, %v270
      %v273 = vld [vmem:[%s3] sm:$0x1]
      %v275 = vlaneseq
      %v276 = vshrl.u32 %v275, 7
      %v277 = vsub.s32 0, %v276
      %v278 = vrot.slane %v273, %v277
      %v280 = vadd.f32 %v272, %v278
      %v281 = vld [vmem:[%s259] sm:$0xff]
      %v282 = vld [vmem:[%s4] sm:$0x1]
      %v284 = vlaneseq
      %v285 = vshrl.u32 %v284, 7
      %v286 = vsub.s32 0, %v285
      %v287 = vrot.slane %v282, %v286
      %v289 = vmul.f32 %v281, %v287
      %v290 = vadd.f32 %v280, %v289
      %v291 = vld [vmem:[%s5] sm:$0x1]
      %v293 = vlaneseq
      %v294 = vshrl.u32 %v293, 7
      %v295 = vsub.s32 0, %v294
      %v296 = vrot.slane %v291, %v295
      %v298 = vadd.f32 %v290, %v296
      %v299 = vmax.f32 %v298, 0.0
      %vm300 = vcmask 64512
      %301 = vst.msk [vmem:[%s263] sm:$0xff] %vm300, %v299
      %p302 = scmp.lt.s32.totalorder %s17, 1
      %s303 = scalar_select %p302, %s17, 1
      %s304 = smul.addr %s303, 8
      %s305 = scalar_lea.vmem %s6, %s304
      // Predicated region
      $region45: #{residual_block_forward.5} parent=43 // pred_check
        %p306 = pneg %p171
      $region46: #{residual_block_forward.5} parent=43 // pred_check_branch
        %308 = sbr.rel (%p306) target = $region48
      $region47: #{residual_block_forward.5} parent=43 // pred_region
        _
      $region48: #{residual_block_forward.5} parent=43 // pred_fallthru
        _
    $region44: #{residual_block_forward.5} parent=5 // pred_fallthru
      _
    %p309 = scmp.le.s32.totalorder 2, %s12
    // Predicated region
    $region49: #{residual_block_forward.5} parent=5 // pred_check
      %p310 = pneg %p309
    $region50: #{residual_block_forward.5} parent=5 // pred_check_branch
      %312 = sbr.rel (%p310) target = $region52
    $region51: #{residual_block_forward.5} parent=5 // pred_region
      %s313 = ssub.s32 %s12, 2
      // Predicated region
      $region53: #{residual_block_forward.5} parent=51 // pred_check
        %p314 = pneg %p177
      $region54: #{residual_block_forward.5} parent=51 // pred_check_branch
        %316 = sbr.rel (%p314) target = $region56
      $region55: #{residual_block_forward.5} parent=51 // pred_region
        %p317 = scmp.lt.s32.totalorder %s18, 1
        %s318 = scalar_select %p317, %s18, 1
        %s319 = smul.addr %s318, 8
        %s320 = scalar_lea.vmem %s6, %s319
      $region56: #{residual_block_forward.5} parent=51 // pred_fallthru
        _
    $region52: #{residual_block_forward.5} parent=5 // pred_fallthru
      _
  $region6: #{residual_block_forward.5} parent=0 // loop_footer
    %s16 = sadd.s32 1, %s12
  $region7: #{residual_block_forward.5} parent=0 // loop_footer_branch
    %11 = sbr.rel target = $region3
  $region8: #{residual_block_forward.5} parent=0 // loop_exit
    _

</llo_original>
